<compile_context>
chip_gen: v5e
topology: v5e:2x2
jax: 0.10.0
libtpu: 0.0.40
codegen_flags: <defaults>
</compile_context>

<pallas_src>
import numpy as np
import jax
import jax.numpy as jnp
from jax import lax
from jax.experimental import pallas as pl
from jax.experimental.pallas import tpu as pltpu

_HIGHEST = lax.Precision.HIGHEST   # reference-side full-precision matmuls
_SUBLANE = 8
_LANE = 128


def _round_up(x, m):
    return ((x + m - 1) // m) * m


# ----------------------------- Pallas kernel ------------------------------- #

def _make_fused_kernel(conv_shapes, H, W, k, block_b):
    """Fused ConvNet forward for one block of `block_b` images.

    Ref order:
      x_ref                   (1, Cin_pad0, B*hw)      f32, images stacked on lanes
      mask_ref                (k*k, B*hw)              f32 0/1 boundary masks
      [w_ref, b_ref]*n_conv   (Cout, k*k*Cin_pad) bf16, (Cout, 1) f32
      wl_ref                  (C_last, hw, OUT_PAD)    bf16 (NCHW-flatten ordered)
      bl_ref                  (1, OUT_PAD)             f32
      o_ref                   (B, OUT_PAD)             f32
      tap_scr                 (k*k*Cin_max, B*hw)      f32 scratch (tap slab)
      h_scr                   (C_last, B, hw)          f32 scratch (linear relayout)
    """
    pad = (k - 1) // 2
    hw = H * W
    bhw = block_b * hw
    kk = k * k
    n_conv = len(conv_shapes)

    # Static lane-roll shifts for the k*k taps.  Boundary masks (host-built)
    # zero every position whose source pixel crosses an image boundary, which
    # also covers rolls that wrap across the stacked-image boundaries.
    shifts = []
    for dy in range(k):
        for dx in range(k):
            shifts.append((-((dy - pad) * W + (dx - pad))) % bhw)

    def kernel(*refs):
        x_ref, mask_ref = refs[0], refs[1]
        conv_refs = refs[2:2 + 2 * n_conv]
        wl_ref = refs[2 + 2 * n_conv]
        bl_ref = refs[3 + 2 * n_conv]
        o_ref = refs[4 + 2 * n_conv]
        tap_scr = refs[5 + 2 * n_conv]
        h_scr = refs[6 + 2 * n_conv]

        h = x_ref[0]                                        # (Cin_pad0, B*hw) f32
        for l, (cin, cout) in enumerate(conv_shapes):
            w_ref, b_ref = conv_refs[2 * l], conv_refs[2 * l + 1]
            if h.shape[0] < cin:                            # static zero channel pad
                h = jnp.concatenate(
                    [h, jnp.zeros((cin - h.shape[0], bhw), h.dtype)], axis=0)
            # Build the (k*k*cin, B*hw) tap slab one tap at a time into VMEM
            # scratch (bounds vreg pressure; rows are (8,128)-tile aligned).
            for t, s in enumerate(shifts):
                rolled = h if s == 0 else pltpu.roll(h, shift=s, axis=1)
                tap = rolled if s == 0 else rolled * mask_ref[t:t + 1, :]
                tap_scr[pl.ds(t * cin, cin), :] = tap
            # Single MXU matmul per conv layer: bf16 operands, f32 accumulate.
            z = jnp.dot(w_ref[...],
                        tap_scr[pl.ds(0, kk * cin), :].astype(jnp.bfloat16),
                        preferred_element_type=jnp.float32)  # (cout, B*hw)
            h = jnp.maximum(z + b_ref[...], 0.0)             # bias + ReLU in f32

        # Linear.  Move the batch from lanes to sublanes through a VMEM scratch
        # (one aligned slice store per image), then ONE batched contraction
        # over channels ('cbp,cpn->cbn') + a single reduction over C.
        for b in range(block_b):
            h_scr[:, b, :] = h[:, b * hw:(b + 1) * hw]
        zl = lax.dot_general(h_scr[...].astype(jnp.bfloat16), wl_ref[...],
                             dimension_numbers=(((2,), (1,)), ((0,), (0,))),
                             preferred_element_type=jnp.float32)  # (C, B, OUT_PAD)
        o_ref[...] = (jnp.sum(zl, axis=0) + bl_ref[...]).astype(o_ref.dtype)

    return kernel


# ----------------------------- host helpers -------------------------------- #

def _boundary_masks(H, W, k, block_b):
    """(k*k, block_b*H*W) f32 0/1 masks: validity of each tap's source pixel."""
    pad = (k - 1) // 2
    hw = H * W
    p = np.arange(hw)
    yy, xx = p // W, p % W
    rows = []
    for dy in range(k):
        for dx in range(k):
            oy, ox = dy - pad, dx - pad
            m = ((yy + oy >= 0) & (yy + oy < H) &
                 (xx + ox >= 0) & (xx + ox < W)).astype(np.float32)
            rows.append(np.tile(m, block_b))
    return jnp.asarray(np.stack(rows, axis=0))


# ------------------------------- wrapper ----------------------------------- #

def convnet_forward(prep, x_nchw, block_b=None):
    """Fused Pallas forward.  x_nchw: (N, Cin, H, W) -> (N, out_dims)."""
    n, cin, H, W = x_nchw.shape
    hw = H * W
    k = prep["kernel_size"]
    out_dims = prep["out_dims"]
    conv_params = prep["conv"]
    conv_shapes = prep["conv_shapes"]
    wl3, bl_pad = prep["linear"]
    out_pad = bl_pad.shape[1]
    cin_pad0 = conv_shapes[0][0]
    c_last = conv_shapes[-1][1]
    kk_cin_max = max(k * k * cs[0] for cs in conv_shapes)

    if block_b is None:
        block_b = n if n <= 8 else 8
    assert n % block_b == 0, "batch must be divisible by the batch block"
    n_blocks = n // block_b
    bhw = block_b * hw

    # NCHW -> channel-padded, images of a block stacked along the lane axis.
    x = jnp.pad(x_nchw.astype(jnp.float32),
                ((0, 0), (0, cin_pad0 - cin), (0, 0), (0, 0)))
    x = x.reshape(n_blocks, block_b, cin_pad0, hw)
    x = jnp.transpose(x, (0, 2, 1, 3)).reshape(n_blocks, cin_pad0, bhw)

    masks = _boundary_masks(H, W, k, block_b)              # (k*k, B*hw) f32

    in_specs = [pl.BlockSpec((1, cin_pad0, bhw), lambda i: (i, 0, 0)),
                pl.BlockSpec(masks.shape, lambda i: (0, 0))]
    args = [x, masks]
    for wm, bm in conv_params:
        in_specs.append(pl.BlockSpec(wm.shape, lambda i: (0, 0)))
        in_specs.append(pl.BlockSpec(bm.shape, lambda i: (0, 0)))
        args += [wm, bm]
    in_specs.append(pl.BlockSpec(wl3.shape, lambda i: (0, 0, 0)))
    in_specs.append(pl.BlockSpec(bl_pad.shape, lambda i: (0, 0)))
    args += [wl3, bl_pad]

    out = pl.pallas_call(
        _make_fused_kernel(conv_shapes, H, W, k, block_b),
        out_shape=jax.ShapeDtypeStruct((n, out_pad), jnp.float32),
        grid=(n_blocks,),
        in_specs=in_specs,
        out_specs=pl.BlockSpec((block_b, out_pad), lambda i: (i, 0)),
        scratch_shapes=[pltpu.VMEM((kk_cin_max, bhw), jnp.float32),
                        pltpu.VMEM((c_last, block_b, hw), jnp.float32)],
        compiler_params=pltpu.CompilerParams(
            dimension_semantics=("parallel",)),   # only matters when n_blocks > 1
    )(*args)
    return out[:, :out_dims]


# --------------------------- params & reference ----------------------------- #

def init_convnet(key, input_dims, layer_dims, out_dims, kernel_size):
    """Synthetic parameters with the same shapes/semantics as the torch ConvNet."""
    k = kernel_size
    params = {"conv": []}
    keys = jax.random.split(key, len(layer_dims) + 1)
    for i in range(len(layer_dims) - 1):
        cin, cout = layer_dims[i], layer_dims[i + 1]
        w = 0.1 * jax.random.normal(keys[i], (k, k, cin, cout), jnp.float32)  # HWIO
        b = 0.01 * jax.random.normal(jax.random.fold_in(keys[i], 1),
                                     (cout,), jnp.float32)
        params["conv"].append((w, b))
    f = input_dims * layer_dims[-1]
    wl = 0.05 * jax.random.normal(keys[-1], (f, out_dims), jnp.float32)
    bl = 0.01 * jax.random.normal(jax.random.fold_in(keys[-1], 1),
                                  (out_dims,), jnp.float32)
    params["linear"] = (wl, bl)
    return params


def prepare_params(params, kernel_size, H, W):
    """One-time layout plumbing: lane-dense, channel-padded, bf16 MXU weights."""
    k = kernel_size
    hw = H * W
    prep = {"kernel_size": k, "conv": [], "conv_shapes": []}
    for w_hwio, b in params["conv"]:
        cin, cout = w_hwio.shape[2], w_hwio.shape[3]
        cin_pad = _round_up(cin, _SUBLANE)
        # (kH,kW,Cin,Cout) -> (Cout, kH*kW*Cin_pad), tap-major / channel-minor,
        # matching the in-kernel tap-slab ordering (padded channels are zero).
        w_p = jnp.pad(w_hwio, ((0, 0), (0, 0), (0, cin_pad - cin), (0, 0)))
        wm = jnp.transpose(w_p, (3, 0, 1, 2)).reshape(cout, k * k * cin_pad)
        prep["conv"].append((wm.astype(jnp.bfloat16),
                             b.reshape(cout, 1).astype(jnp.float32)))
        prep["conv_shapes"].append((cin_pad, cout))
    wl, bl = params["linear"]
    f, out_dims = wl.shape
    cout_last = params["conv"][-1][0].shape[3]
    assert f == cout_last * hw
    out_pad = max(_LANE, _round_up(out_dims, _LANE))     # lane-dense output slab
    wl_p = jnp.pad(wl, ((0, 0), (0, out_pad - out_dims)))
    wl3 = wl_p.reshape(cout_last, hw, out_pad).astype(jnp.bfloat16)  # NCHW flatten
    bl_p = jnp.pad(bl, (0, out_pad - out_dims)).reshape(1, out_pad).astype(jnp.float32)
    prep["linear"] = (wl3, bl_p)
    prep["out_dims"] = out_dims
    return prep


def convnet_reference(params, x_nchw, kernel_size):
    """Pure-JAX reference mirroring the PyTorch forward (full-f32 precision)."""
    pad = (kernel_size - 1) // 2
    x = x_nchw
    for w, b in params["conv"]:
        x = lax.conv_general_dilated(
            x, w, window_strides=(1, 1), padding=[(pad, pad), (pad, pad)],
            dimension_numbers=("NCHW", "HWIO", "NCHW"), precision=_HIGHEST)
        x = jax.nn.relu(x + b[None, :, None, None])
    x = x.reshape(x.shape[0], -1)
    wl, bl = params["linear"]
    return jnp.dot(x, wl, precision=_HIGHEST) + bl


# --------------------------------- main ------------------------------------ #

if __name__ == "__main__":
    H = W = 16
    layer_dims = [4, 8, 8]            # 2 conv layers: 4->8, 8->8
    input_dims = H * W                # 256, as in ConvNet(input_dims, ...)
    out_dims = 10
    kernel_size = 3
    batch = 2

    key = jax.random.PRNGKey(0)
    params = init_convnet(jax.random.fold_in(key, 1), input_dims, layer_dims,
                          out_dims, kernel_size)
    prep = prepare_params(params, kernel_size, H, W)
    x = jax.random.normal(jax.random.fold_in(key, 2),
                          (batch, layer_dims[0], H, W), jnp.float32)   # NCHW

    y = convnet_forward(prep, x)
    y = jax.block_until_ready(y)
    assert y.shape == (batch, out_dims)

    y_ref = convnet_reference(params, x, kernel_size)
    # Tolerance matches bf16 MXU operands with f32 accumulation (per the perf
    # review); still tight enough to catch any layout / indexing bug.
    np.testing.assert_allclose(np.asarray(y), np.asarray(y_ref),
                               rtol=3e-2, atol=3e-2)
    print("KERNEL_OK")
</pallas_src>

<mosaic_0001>
module attributes {stable_mosaic.version = 11 : i64} {
  func.func @kernel(%arg0: i32, %arg1: memref<1x8x512xf32, #tpu.memory_space<vmem>>, %arg2: memref<9x512xf32, #tpu.memory_space<vmem>>, %arg3: memref<8x72xbf16, #tpu.memory_space<vmem>>, %arg4: memref<8x1xf32, #tpu.memory_space<vmem>>, %arg5: memref<8x72xbf16, #tpu.memory_space<vmem>>, %arg6: memref<8x1xf32, #tpu.memory_space<vmem>>, %arg7: memref<8x256x128xbf16, #tpu.memory_space<vmem>>, %arg8: memref<1x128xf32, #tpu.memory_space<vmem>>, %arg9: memref<2x128xf32, #tpu.memory_space<vmem>>, %arg10: memref<72x512xf32, #tpu.memory_space<vmem>>, %arg11: memref<8x2x256xf32, #tpu.memory_space<vmem>>) attributes {dimension_semantics = [#tpu.dimension_semantics<parallel>], iteration_bounds = array<i64: 1>, scalar_prefetch = 0 : i64, scratch_operands = 2 : i64, tpu.core_type = #tpu.core_type<tc>, window_params = [{transform_indices = @transform_0, window_bounds = array<i64: 1, 8, 512>}, {pipeline_mode = #tpu.pipeline_mode<synchronous>, transform_indices = @transform_1, window_bounds = array<i64: 9, 512>}, {pipeline_mode = #tpu.pipeline_mode<synchronous>, transform_indices = @transform_2, window_bounds = array<i64: 8, 72>}, {pipeline_mode = #tpu.pipeline_mode<synchronous>, transform_indices = @transform_3, window_bounds = array<i64: 8, 1>}, {pipeline_mode = #tpu.pipeline_mode<synchronous>, transform_indices = @transform_4, window_bounds = array<i64: 8, 72>}, {pipeline_mode = #tpu.pipeline_mode<synchronous>, transform_indices = @transform_5, window_bounds = array<i64: 8, 1>}, {pipeline_mode = #tpu.pipeline_mode<synchronous>, transform_indices = @transform_6, window_bounds = array<i64: 8, 256, 128>}, {pipeline_mode = #tpu.pipeline_mode<synchronous>, transform_indices = @transform_7, window_bounds = array<i64: 1, 128>}, {transform_indices = @transform_8, window_bounds = array<i64: 2, 128>}]} {
    %c0 = arith.constant 0 : index
    %c0_0 = arith.constant 0 : index
    %c0_1 = arith.constant 0 : index
    %0 = vector.load %arg1[%c0, %c0_0, %c0_1] : memref<1x8x512xf32, #tpu.memory_space<vmem>>, vector<1x8x512xf32>
    %1 = vector.shape_cast %0 : vector<1x8x512xf32> to vector<8x512xf32>
    %c17_i32 = arith.constant 17 : i32
    %2 = tpu.dynamic_rotate %1 by %c17_i32 dim 1 : vector<8x512xf32>, i32 -> vector<8x512xf32>
    %c0_2 = arith.constant 0 : index
    %c0_3 = arith.constant 0 : index
    %3 = vector.load %arg2[%c0_2, %c0_3] : memref<9x512xf32, #tpu.memory_space<vmem>>, vector<1x512xf32>
    %4 = vector.broadcast %3 : vector<1x512xf32> to vector<8x512xf32>
    %5 = arith.mulf %2, %4 : vector<8x512xf32>
    %c0_4 = arith.constant 0 : index
    %c0_5 = arith.constant 0 : index
    %6 = vector.load %arg10[%c0_4, %c0_5] : memref<72x512xf32, #tpu.memory_space<vmem>>, vector<8x512xf32>
    tpu.vector_store %arg10[%c0_4, %c0_5], %5 {strides = array<i32>} : memref<72x512xf32, #tpu.memory_space<vmem>>, vector<8x512xf32>,
    %c16_i32 = arith.constant 16 : i32
    %7 = tpu.dynamic_rotate %1 by %c16_i32 dim 1 : vector<8x512xf32>, i32 -> vector<8x512xf32>
    %c1 = arith.constant 1 : index
    %c0_6 = arith.constant 0 : index
    %8 = vector.load %arg2[%c1, %c0_6] : memref<9x512xf32, #tpu.memory_space<vmem>>, vector<1x512xf32>
    %9 = vector.broadcast %8 : vector<1x512xf32> to vector<8x512xf32>
    %10 = arith.mulf %7, %9 : vector<8x512xf32>
    %c8 = arith.constant 8 : index
    %c0_7 = arith.constant 0 : index
    %11 = vector.load %arg10[%c8, %c0_7] : memref<72x512xf32, #tpu.memory_space<vmem>>, vector<8x512xf32>
    tpu.vector_store %arg10[%c8, %c0_7], %10 {strides = array<i32>} : memref<72x512xf32, #tpu.memory_space<vmem>>, vector<8x512xf32>,
    %c15_i32 = arith.constant 15 : i32
    %12 = tpu.dynamic_rotate %1 by %c15_i32 dim 1 : vector<8x512xf32>, i32 -> vector<8x512xf32>
    %c2 = arith.constant 2 : index
    %c0_8 = arith.constant 0 : index
    %13 = vector.load %arg2[%c2, %c0_8] : memref<9x512xf32, #tpu.memory_space<vmem>>, vector<1x512xf32>
    %14 = vector.broadcast %13 : vector<1x512xf32> to vector<8x512xf32>
    %15 = arith.mulf %12, %14 : vector<8x512xf32>
    %c16 = arith.constant 16 : index
    %c0_9 = arith.constant 0 : index
    %16 = vector.load %arg10[%c16, %c0_9] : memref<72x512xf32, #tpu.memory_space<vmem>>, vector<8x512xf32>
    tpu.vector_store %arg10[%c16, %c0_9], %15 {strides = array<i32>} : memref<72x512xf32, #tpu.memory_space<vmem>>, vector<8x512xf32>,
    %c1_i32 = arith.constant 1 : i32
    %17 = tpu.dynamic_rotate %1 by %c1_i32 dim 1 : vector<8x512xf32>, i32 -> vector<8x512xf32>
    %c3 = arith.constant 3 : index
    %c0_10 = arith.constant 0 : index
    %18 = vector.load %arg2[%c3, %c0_10] : memref<9x512xf32, #tpu.memory_space<vmem>>, vector<1x512xf32>
    %19 = vector.broadcast %18 : vector<1x512xf32> to vector<8x512xf32>
    %20 = arith.mulf %17, %19 : vector<8x512xf32>
    %c24 = arith.constant 24 : index
    %c0_11 = arith.constant 0 : index
    %21 = vector.load %arg10[%c24, %c0_11] : memref<72x512xf32, #tpu.memory_space<vmem>>, vector<8x512xf32>
    tpu.vector_store %arg10[%c24, %c0_11], %20 {strides = array<i32>} : memref<72x512xf32, #tpu.memory_space<vmem>>, vector<8x512xf32>,
    %c32 = arith.constant 32 : index
    %c0_12 = arith.constant 0 : index
    %22 = vector.load %arg10[%c32, %c0_12] : memref<72x512xf32, #tpu.memory_space<vmem>>, vector<8x512xf32>
    tpu.vector_store %arg10[%c32, %c0_12], %1 {strides = array<i32>} : memref<72x512xf32, #tpu.memory_space<vmem>>, vector<8x512xf32>,
    %c511_i32 = arith.constant 511 : i32
    %23 = tpu.dynamic_rotate %1 by %c511_i32 dim 1 : vector<8x512xf32>, i32 -> vector<8x512xf32>
    %c5 = arith.constant 5 : index
    %c0_13 = arith.constant 0 : index
    %24 = vector.load %arg2[%c5, %c0_13] : memref<9x512xf32, #tpu.memory_space<vmem>>, vector<1x512xf32>
    %25 = vector.broadcast %24 : vector<1x512xf32> to vector<8x512xf32>
    %26 = arith.mulf %23, %25 : vector<8x512xf32>
    %c40 = arith.constant 40 : index
    %c0_14 = arith.constant 0 : index
    %27 = vector.load %arg10[%c40, %c0_14] : memref<72x512xf32, #tpu.memory_space<vmem>>, vector<8x512xf32>
    tpu.vector_store %arg10[%c40, %c0_14], %26 {strides = array<i32>} : memref<72x512xf32, #tpu.memory_space<vmem>>, vector<8x512xf32>,
    %c497_i32 = arith.constant 497 : i32
    %28 = tpu.dynamic_rotate %1 by %c497_i32 dim 1 : vector<8x512xf32>, i32 -> vector<8x512xf32>
    %c6 = arith.constant 6 : index
    %c0_15 = arith.constant 0 : index
    %29 = vector.load %arg2[%c6, %c0_15] : memref<9x512xf32, #tpu.memory_space<vmem>>, vector<1x512xf32>
    %30 = vector.broadcast %29 : vector<1x512xf32> to vector<8x512xf32>
    %31 = arith.mulf %28, %30 : vector<8x512xf32>
    %c48 = arith.constant 48 : index
    %c0_16 = arith.constant 0 : index
    %32 = vector.load %arg10[%c48, %c0_16] : memref<72x512xf32, #tpu.memory_space<vmem>>, vector<8x512xf32>
    tpu.vector_store %arg10[%c48, %c0_16], %31 {strides = array<i32>} : memref<72x512xf32, #tpu.memory_space<vmem>>, vector<8x512xf32>,
    %c496_i32 = arith.constant 496 : i32
    %33 = tpu.dynamic_rotate %1 by %c496_i32 dim 1 : vector<8x512xf32>, i32 -> vector<8x512xf32>
    %c7 = arith.constant 7 : index
    %c0_17 = arith.constant 0 : index
    %34 = vector.load %arg2[%c7, %c0_17] : memref<9x512xf32, #tpu.memory_space<vmem>>, vector<1x512xf32>
    %35 = vector.broadcast %34 : vector<1x512xf32> to vector<8x512xf32>
    %36 = arith.mulf %33, %35 : vector<8x512xf32>
    %c56 = arith.constant 56 : index
    %c0_18 = arith.constant 0 : index
    %37 = vector.load %arg10[%c56, %c0_18] : memref<72x512xf32, #tpu.memory_space<vmem>>, vector<8x512xf32>
    tpu.vector_store %arg10[%c56, %c0_18], %36 {strides = array<i32>} : memref<72x512xf32, #tpu.memory_space<vmem>>, vector<8x512xf32>,
    %c495_i32 = arith.constant 495 : i32
    %38 = tpu.dynamic_rotate %1 by %c495_i32 dim 1 : vector<8x512xf32>, i32 -> vector<8x512xf32>
    %c8_19 = arith.constant 8 : index
    %c0_20 = arith.constant 0 : index
    %39 = vector.load %arg2[%c8_19, %c0_20] : memref<9x512xf32, #tpu.memory_space<vmem>>, vector<1x512xf32>
    %40 = vector.broadcast %39 : vector<1x512xf32> to vector<8x512xf32>
    %41 = arith.mulf %38, %40 : vector<8x512xf32>
    %c64 = arith.constant 64 : index
    %c0_21 = arith.constant 0 : index
    %42 = vector.load %arg10[%c64, %c0_21] : memref<72x512xf32, #tpu.memory_space<vmem>>, vector<8x512xf32>
    tpu.vector_store %arg10[%c64, %c0_21], %41 {strides = array<i32>} : memref<72x512xf32, #tpu.memory_space<vmem>>, vector<8x512xf32>,
    %c0_22 = arith.constant 0 : index
    %c0_23 = arith.constant 0 : index
    %43 = vector.load %arg3[%c0_22, %c0_23] : memref<8x72xbf16, #tpu.memory_space<vmem>>, vector<8x72xbf16>
    %c0_24 = arith.constant 0 : index
    %c0_25 = arith.constant 0 : index
    %44 = vector.load %arg10[%c0_24, %c0_25] : memref<72x512xf32, #tpu.memory_space<vmem>>, vector<72x512xf32>
    %45 = arith.truncf %44 : vector<72x512xf32> to vector<72x512xbf16>
    %cst = arith.constant dense<0.000000e+00> : vector<8x512xf32>
    %46 = tpu.matmul %43, %45, %cst {dimension_numbers = #tpu.dot_dimension_numbers<[1], [0], [0], [1], [0, 0, 1, 1], [], []>} : vector<8x72xbf16>, vector<72x512xbf16>, vector<8x512xf32> -> vector<8x512xf32>
    %c0_26 = arith.constant 0 : index
    %c0_27 = arith.constant 0 : index
    %47 = vector.load %arg4[%c0_26, %c0_27] : memref<8x1xf32, #tpu.memory_space<vmem>>, vector<8x1xf32>
    %48 = vector.broadcast %47 : vector<8x1xf32> to vector<8x512xf32>
    %49 = arith.addf %46, %48 : vector<8x512xf32>
    %cst_28 = arith.constant 0.000000e+00 : f32
    %50 = vector.broadcast %cst_28 : f32 to vector<8x512xf32>
    %51 = arith.maximumf %49, %50 : vector<8x512xf32>
    %c17_i32_29 = arith.constant 17 : i32
    %52 = tpu.dynamic_rotate %51 by %c17_i32_29 dim 1 : vector<8x512xf32>, i32 -> vector<8x512xf32>
    %c0_30 = arith.constant 0 : index
    %c0_31 = arith.constant 0 : index
    %53 = vector.load %arg2[%c0_30, %c0_31] : memref<9x512xf32, #tpu.memory_space<vmem>>, vector<1x512xf32>
    %54 = vector.broadcast %53 : vector<1x512xf32> to vector<8x512xf32>
    %55 = arith.mulf %52, %54 : vector<8x512xf32>
    %c0_32 = arith.constant 0 : index
    %c0_33 = arith.constant 0 : index
    %56 = vector.load %arg10[%c0_32, %c0_33] : memref<72x512xf32, #tpu.memory_space<vmem>>, vector<8x512xf32>
    tpu.vector_store %arg10[%c0_32, %c0_33], %55 {strides = array<i32>} : memref<72x512xf32, #tpu.memory_space<vmem>>, vector<8x512xf32>,
    %c16_i32_34 = arith.constant 16 : i32
    %57 = tpu.dynamic_rotate %51 by %c16_i32_34 dim 1 : vector<8x512xf32>, i32 -> vector<8x512xf32>
    %c1_35 = arith.constant 1 : index
    %c0_36 = arith.constant 0 : index
    %58 = vector.load %arg2[%c1_35, %c0_36] : memref<9x512xf32, #tpu.memory_space<vmem>>, vector<1x512xf32>
    %59 = vector.broadcast %58 : vector<1x512xf32> to vector<8x512xf32>
    %60 = arith.mulf %57, %59 : vector<8x512xf32>
    %c8_37 = arith.constant 8 : index
    %c0_38 = arith.constant 0 : index
    %61 = vector.load %arg10[%c8_37, %c0_38] : memref<72x512xf32, #tpu.memory_space<vmem>>, vector<8x512xf32>
    tpu.vector_store %arg10[%c8_37, %c0_38], %60 {strides = array<i32>} : memref<72x512xf32, #tpu.memory_space<vmem>>, vector<8x512xf32>,
    %c15_i32_39 = arith.constant 15 : i32
    %62 = tpu.dynamic_rotate %51 by %c15_i32_39 dim 1 : vector<8x512xf32>, i32 -> vector<8x512xf32>
    %c2_40 = arith.constant 2 : index
    %c0_41 = arith.constant 0 : index
    %63 = vector.load %arg2[%c2_40, %c0_41] : memref<9x512xf32, #tpu.memory_space<vmem>>, vector<1x512xf32>
    %64 = vector.broadcast %63 : vector<1x512xf32> to vector<8x512xf32>
    %65 = arith.mulf %62, %64 : vector<8x512xf32>
    %c16_42 = arith.constant 16 : index
    %c0_43 = arith.constant 0 : index
    %66 = vector.load %arg10[%c16_42, %c0_43] : memref<72x512xf32, #tpu.memory_space<vmem>>, vector<8x512xf32>
    tpu.vector_store %arg10[%c16_42, %c0_43], %65 {strides = array<i32>} : memref<72x512xf32, #tpu.memory_space<vmem>>, vector<8x512xf32>,
    %c1_i32_44 = arith.constant 1 : i32
    %67 = tpu.dynamic_rotate %51 by %c1_i32_44 dim 1 : vector<8x512xf32>, i32 -> vector<8x512xf32>
    %c3_45 = arith.constant 3 : index
    %c0_46 = arith.constant 0 : index
    %68 = vector.load %arg2[%c3_45, %c0_46] : memref<9x512xf32, #tpu.memory_space<vmem>>, vector<1x512xf32>
    %69 = vector.broadcast %68 : vector<1x512xf32> to vector<8x512xf32>
    %70 = arith.mulf %67, %69 : vector<8x512xf32>
    %c24_47 = arith.constant 24 : index
    %c0_48 = arith.constant 0 : index
    %71 = vector.load %arg10[%c24_47, %c0_48] : memref<72x512xf32, #tpu.memory_space<vmem>>, vector<8x512xf32>
    tpu.vector_store %arg10[%c24_47, %c0_48], %70 {strides = array<i32>} : memref<72x512xf32, #tpu.memory_space<vmem>>, vector<8x512xf32>,
    %c32_49 = arith.constant 32 : index
    %c0_50 = arith.constant 0 : index
    %72 = vector.load %arg10[%c32_49, %c0_50] : memref<72x512xf32, #tpu.memory_space<vmem>>, vector<8x512xf32>
    tpu.vector_store %arg10[%c32_49, %c0_50], %51 {strides = array<i32>} : memref<72x512xf32, #tpu.memory_space<vmem>>, vector<8x512xf32>,
    %c511_i32_51 = arith.constant 511 : i32
    %73 = tpu.dynamic_rotate %51 by %c511_i32_51 dim 1 : vector<8x512xf32>, i32 -> vector<8x512xf32>
    %c5_52 = arith.constant 5 : index
    %c0_53 = arith.constant 0 : index
    %74 = vector.load %arg2[%c5_52, %c0_53] : memref<9x512xf32, #tpu.memory_space<vmem>>, vector<1x512xf32>
    %75 = vector.broadcast %74 : vector<1x512xf32> to vector<8x512xf32>
    %76 = arith.mulf %73, %75 : vector<8x512xf32>
    %c40_54 = arith.constant 40 : index
    %c0_55 = arith.constant 0 : index
    %77 = vector.load %arg10[%c40_54, %c0_55] : memref<72x512xf32, #tpu.memory_space<vmem>>, vector<8x512xf32>
    tpu.vector_store %arg10[%c40_54, %c0_55], %76 {strides = array<i32>} : memref<72x512xf32, #tpu.memory_space<vmem>>, vector<8x512xf32>,
    %c497_i32_56 = arith.constant 497 : i32
    %78 = tpu.dynamic_rotate %51 by %c497_i32_56 dim 1 : vector<8x512xf32>, i32 -> vector<8x512xf32>
    %c6_57 = arith.constant 6 : index
    %c0_58 = arith.constant 0 : index
    %79 = vector.load %arg2[%c6_57, %c0_58] : memref<9x512xf32, #tpu.memory_space<vmem>>, vector<1x512xf32>
    %80 = vector.broadcast %79 : vector<1x512xf32> to vector<8x512xf32>
    %81 = arith.mulf %78, %80 : vector<8x512xf32>
    %c48_59 = arith.constant 48 : index
    %c0_60 = arith.constant 0 : index
    %82 = vector.load %arg10[%c48_59, %c0_60] : memref<72x512xf32, #tpu.memory_space<vmem>>, vector<8x512xf32>
    tpu.vector_store %arg10[%c48_59, %c0_60], %81 {strides = array<i32>} : memref<72x512xf32, #tpu.memory_space<vmem>>, vector<8x512xf32>,
    %c496_i32_61 = arith.constant 496 : i32
    %83 = tpu.dynamic_rotate %51 by %c496_i32_61 dim 1 : vector<8x512xf32>, i32 -> vector<8x512xf32>
    %c7_62 = arith.constant 7 : index
    %c0_63 = arith.constant 0 : index
    %84 = vector.load %arg2[%c7_62, %c0_63] : memref<9x512xf32, #tpu.memory_space<vmem>>, vector<1x512xf32>
    %85 = vector.broadcast %84 : vector<1x512xf32> to vector<8x512xf32>
    %86 = arith.mulf %83, %85 : vector<8x512xf32>
    %c56_64 = arith.constant 56 : index
    %c0_65 = arith.constant 0 : index
    %87 = vector.load %arg10[%c56_64, %c0_65] : memref<72x512xf32, #tpu.memory_space<vmem>>, vector<8x512xf32>
    tpu.vector_store %arg10[%c56_64, %c0_65], %86 {strides = array<i32>} : memref<72x512xf32, #tpu.memory_space<vmem>>, vector<8x512xf32>,
    %c495_i32_66 = arith.constant 495 : i32
    %88 = tpu.dynamic_rotate %51 by %c495_i32_66 dim 1 : vector<8x512xf32>, i32 -> vector<8x512xf32>
    %c8_67 = arith.constant 8 : index
    %c0_68 = arith.constant 0 : index
    %89 = vector.load %arg2[%c8_67, %c0_68] : memref<9x512xf32, #tpu.memory_space<vmem>>, vector<1x512xf32>
    %90 = vector.broadcast %89 : vector<1x512xf32> to vector<8x512xf32>
    %91 = arith.mulf %88, %90 : vector<8x512xf32>
    %c64_69 = arith.constant 64 : index
    %c0_70 = arith.constant 0 : index
    %92 = vector.load %arg10[%c64_69, %c0_70] : memref<72x512xf32, #tpu.memory_space<vmem>>, vector<8x512xf32>
    tpu.vector_store %arg10[%c64_69, %c0_70], %91 {strides = array<i32>} : memref<72x512xf32, #tpu.memory_space<vmem>>, vector<8x512xf32>,
    %c0_71 = arith.constant 0 : index
    %c0_72 = arith.constant 0 : index
    %93 = vector.load %arg5[%c0_71, %c0_72] : memref<8x72xbf16, #tpu.memory_space<vmem>>, vector<8x72xbf16>
    %c0_73 = arith.constant 0 : index
    %c0_74 = arith.constant 0 : index
    %94 = vector.load %arg10[%c0_73, %c0_74] : memref<72x512xf32, #tpu.memory_space<vmem>>, vector<72x512xf32>
    %95 = arith.truncf %94 : vector<72x512xf32> to vector<72x512xbf16>
    %cst_75 = arith.constant dense<0.000000e+00> : vector<8x512xf32>
    %96 = tpu.matmul %93, %95, %cst_75 {dimension_numbers = #tpu.dot_dimension_numbers<[1], [0], [0], [1], [0, 0, 1, 1], [], []>} : vector<8x72xbf16>, vector<72x512xbf16>, vector<8x512xf32> -> vector<8x512xf32>
    %c0_76 = arith.constant 0 : index
    %c0_77 = arith.constant 0 : index
    %97 = vector.load %arg6[%c0_76, %c0_77] : memref<8x1xf32, #tpu.memory_space<vmem>>, vector<8x1xf32>
    %98 = vector.broadcast %97 : vector<8x1xf32> to vector<8x512xf32>
    %99 = arith.addf %96, %98 : vector<8x512xf32>
    %cst_78 = arith.constant 0.000000e+00 : f32
    %100 = vector.broadcast %cst_78 : f32 to vector<8x512xf32>
    %101 = arith.maximumf %99, %100 : vector<8x512xf32>
    %102 = vector.extract_strided_slice %101 {offsets = [0, 0], sizes = [8, 256], strides = [1, 1]} : vector<8x512xf32> to vector<8x256xf32>
    %c0_79 = arith.constant 0 : index
    %c0_80 = arith.constant 0 : index
    %c0_81 = arith.constant 0 : index
    %103 = vector.load %arg11[%c0_79, %c0_80, %c0_81] : memref<8x2x256xf32, #tpu.memory_space<vmem>>, vector<8x1x256xf32>
    %104 = vector.shape_cast %103 : vector<8x1x256xf32> to vector<8x256xf32>
    %105 = vector.shape_cast %102 : vector<8x256xf32> to vector<8x1x256xf32>
    tpu.vector_store %arg11[%c0_79, %c0_80, %c0_81], %105 {strides = array<i32>} : memref<8x2x256xf32, #tpu.memory_space<vmem>>, vector<8x1x256xf32>,
    %106 = vector.extract_strided_slice %101 {offsets = [0, 256], sizes = [8, 256], strides = [1, 1]} : vector<8x512xf32> to vector<8x256xf32>
    %c0_82 = arith.constant 0 : index
    %c1_83 = arith.constant 1 : index
    %c0_84 = arith.constant 0 : index
    %107 = vector.load %arg11[%c0_82, %c1_83, %c0_84] : memref<8x2x256xf32, #tpu.memory_space<vmem>>, vector<8x1x256xf32>
    %108 = vector.shape_cast %107 : vector<8x1x256xf32> to vector<8x256xf32>
    %109 = vector.shape_cast %106 : vector<8x256xf32> to vector<8x1x256xf32>
    tpu.vector_store %arg11[%c0_82, %c1_83, %c0_84], %109 {strides = array<i32>} : memref<8x2x256xf32, #tpu.memory_space<vmem>>, vector<8x1x256xf32>,
    %c0_85 = arith.constant 0 : index
    %c0_86 = arith.constant 0 : index
    %c0_87 = arith.constant 0 : index
    %110 = vector.load %arg11[%c0_85, %c0_86, %c0_87] : memref<8x2x256xf32, #tpu.memory_space<vmem>>, vector<8x2x256xf32>
    %111 = arith.truncf %110 : vector<8x2x256xf32> to vector<8x2x256xbf16>
    %c0_88 = arith.constant 0 : index
    %c0_89 = arith.constant 0 : index
    %c0_90 = arith.constant 0 : index
    %112 = vector.load %arg7[%c0_88, %c0_89, %c0_90] : memref<8x256x128xbf16, #tpu.memory_space<vmem>>, vector<8x256x128xbf16>
    %cst_91 = arith.constant dense<0.000000e+00> : vector<8x2x128xf32>
    %113 = tpu.matmul %111, %112, %cst_91 {dimension_numbers = #tpu.dot_dimension_numbers<[2], [1], [1], [2], [0, 0, 0, 1, 1, 2], [0], [0]>} : vector<8x2x256xbf16>, vector<8x256x128xbf16>, vector<8x2x128xf32> -> vector<8x2x128xf32>
    %cst_92 = arith.constant dense<0.000000e+00> : vector<2x128xf32>
    %114 = vector.multi_reduction <add>, %113, %cst_92 [0] : vector<8x2x128xf32> to vector<2x128xf32>
    %c0_93 = arith.constant 0 : index
    %c0_94 = arith.constant 0 : index
    %115 = vector.load %arg8[%c0_93, %c0_94] : memref<1x128xf32, #tpu.memory_space<vmem>>, vector<1x128xf32>
    %116 = vector.broadcast %115 : vector<1x128xf32> to vector<2x128xf32>
    %117 = arith.addf %114, %116 : vector<2x128xf32>
    %c0_95 = arith.constant 0 : index
    %c0_96 = arith.constant 0 : index
    %118 = vector.load %arg9[%c0_95, %c0_96] : memref<2x128xf32, #tpu.memory_space<vmem>>, vector<2x128xf32>
    tpu.vector_store %arg9[%c0_95, %c0_96], %117 {strides = array<i32>} : memref<2x128xf32, #tpu.memory_space<vmem>>, vector<2x128xf32>,
    return
  }
  func.func @transform_0(%arg0: i32) -> (i32, i32, i32) {
    %c0_i32 = arith.constant 0 : i32
    %c0_i32_0 = arith.constant 0 : i32
    %c0_i32_1 = arith.constant 0 : i32
    return %arg0, %c0_i32, %c0_i32_0 : i32, i32, i32
  }
  func.func @transform_1(%arg0: i32) -> (i32, i32) {
    %c0_i32 = arith.constant 0 : i32
    %c0_i32_0 = arith.constant 0 : i32
    %c0_i32_1 = arith.constant 0 : i32
    return %c0_i32, %c0_i32_0 : i32, i32
  }
  func.func @transform_2(%arg0: i32) -> (i32, i32) {
    %c0_i32 = arith.constant 0 : i32
    %c0_i32_0 = arith.constant 0 : i32
    %c0_i32_1 = arith.constant 0 : i32
    return %c0_i32, %c0_i32_0 : i32, i32
  }
  func.func @transform_3(%arg0: i32) -> (i32, i32) {
    %c0_i32 = arith.constant 0 : i32
    %c0_i32_0 = arith.constant 0 : i32
    %c0_i32_1 = arith.constant 0 : i32
    return %c0_i32, %c0_i32_0 : i32, i32
  }
  func.func @transform_4(%arg0: i32) -> (i32, i32) {
    %c0_i32 = arith.constant 0 : i32
    %c0_i32_0 = arith.constant 0 : i32
    %c0_i32_1 = arith.constant 0 : i32
    return %c0_i32, %c0_i32_0 : i32, i32
  }
  func.func @transform_5(%arg0: i32) -> (i32, i32) {
    %c0_i32 = arith.constant 0 : i32
    %c0_i32_0 = arith.constant 0 : i32
    %c0_i32_1 = arith.constant 0 : i32
    return %c0_i32, %c0_i32_0 : i32, i32
  }
  func.func @transform_6(%arg0: i32) -> (i32, i32, i32) {
    %c0_i32 = arith.constant 0 : i32
    %c0_i32_0 = arith.constant 0 : i32
    %c0_i32_1 = arith.constant 0 : i32
    %c0_i32_2 = arith.constant 0 : i32
    return %c0_i32, %c0_i32_0, %c0_i32_1 : i32, i32, i32
  }
  func.func @transform_7(%arg0: i32) -> (i32, i32) {
    %c0_i32 = arith.constant 0 : i32
    %c0_i32_0 = arith.constant 0 : i32
    %c0_i32_1 = arith.constant 0 : i32
    return %c0_i32, %c0_i32_0 : i32, i32
  }
  func.func @transform_8(%arg0: i32) -> (i32, i32) {
    %c0_i32 = arith.constant 0 : i32
    %c0_i32_0 = arith.constant 0 : i32
    return %arg0, %c0_i32 : i32, i32
  }
}

</mosaic_0001>

<llo_original>
// kernel: tpu_custom_call.1
$region0: #{tpu_custom_call.1}
  #allocation0 [shape = 'u32[]', space=smem, size = 0x4, offset = 0x4, fixed_abs, tag = 'smem constant byte address 0x4 - core index']
  #allocation1 [shape = 'u32[72,128]{1,0:T(1,128)}', space=vmem, size = 0x9000, scoped, tag = 'internal scratch']
  #allocation2 [shape = 'f32[72,512]{1,0:T(8,128)}', space=vmem, size = 0x24000, scoped, tag = 'scratch operand']
  #allocation3 [shape = 'f32[8,2,256]{2,1,0:T(2,128)}', space=vmem, size = 0x4000, scoped, tag = 'scratch operand']
  %s0 = inlined_call_operand.hbm [shape: f32[1,8,512], index: 0, kind: input, shape index: {}]
  %s1 = inlined_call_operand.hbm [shape: f32[9,512], index: 1, kind: input, shape index: {}]
  %s2 = inlined_call_operand.vmem [shape: bf16[8,72], index: 2, kind: input, shape index: {}]
  %s3 = inlined_call_operand.vmem [shape: f32[8,1], index: 3, kind: input, shape index: {}]
  %s4 = inlined_call_operand.vmem [shape: bf16[8,72], index: 4, kind: input, shape index: {}]
  %s5 = inlined_call_operand.vmem [shape: f32[8,1], index: 5, kind: input, shape index: {}]
  %s6 = inlined_call_operand.hbm [shape: bf16[8,256,128], index: 6, kind: input, shape index: {}]
  %s7 = inlined_call_operand.vmem [shape: f32[1,128], index: 7, kind: input, shape index: {}]
  %s8 = inlined_call_operand.hbm [shape: f32[2,128], index: 8, kind: output, shape index: {}]
  %s9 = sld [smem:[#allocation0]]
  $region54: #{tpu_custom_call.1} parent=0
    _
  %s11 = ssub.s32 1, %s9
  %s12 = scalar_select 0, %s11, %s9
  $region1: #{tpu_custom_call.1} parent=0
    #allocation4 [shape = 'u8[16384]{0}', space=vmem, size = 0x4000, scoped, tag = 'input window, operand 0, single buffered']
    #allocation5 [shape = 's32[1]{0}', space=sflag, size = 0x4, scoped, tag = 'scoped memory for tpu_custom_call.1']
    #allocation6 [shape = 's32[1]{0}', space=sflag, size = 0x4, scoped, tag = 'scoped memory for tpu_custom_call.1']
    #allocation7 [shape = 'u8[32768]{0}', space=vmem, size = 0x8000, scoped, tag = 'input window, operand 1, single buffered']
    #allocation8 [shape = 's32[1]{0}', space=sflag, size = 0x4, scoped, tag = 'scoped memory for tpu_custom_call.1']
    #allocation9 [shape = 'u8[524288]{0}', space=vmem, size = 0x80000, scoped, tag = 'input window, operand 6, single buffered']
    #allocation10 [shape = 'u8[1024]{0}', space=vmem, size = 0x400, scoped, tag = 'output window, operand 0, single buffered']
    %13 = vsyncpa [#allocation5], 0
    %14 = vsyncpa [#allocation8], 0
    %15 = vsyncpa [#allocation6], 0
    // Predicated region
    $region2: #{tpu_custom_call.1} parent=1 // pred_check
      _
    $region3: #{tpu_custom_call.1} parent=1 // pred_check_branch
      %17 = sbr.rel (0) target = $region5
    $region4: #{tpu_custom_call.1} parent=1 // pred_region
      %19 = vsyncadd [#allocation5], 0
      %s21 = sshll.u32 %s0, 4
      %s22 = int_to_ptr.hbm [resolvable:$true] %s21
      %s23 = sshll.u32 [#allocation4], 4
      %s24 = int_to_ptr.vmem [resolvable:$true] %s23
      %26 = dma.hbm_to_vmem [thread:$0]  %s22, 512, %s24, [#allocation5]
    $region5: #{tpu_custom_call.1} parent=1 // pred_fallthru
      _
    // Predicated region
    $region6: #{tpu_custom_call.1} parent=1 // pred_check
      _
    $region7: #{tpu_custom_call.1} parent=1 // pred_check_branch
      %28 = sbr.rel (0) target = $region9
    $region8: #{tpu_custom_call.1} parent=1 // pred_region
      %30 = vsyncadd [#allocation8], 0
      %s31 = sshll.u32 %s1, 4
      %s32 = int_to_ptr.hbm [resolvable:$true] %s31
      %s33 = sshll.u32 [#allocation7], 4
      %s34 = int_to_ptr.vmem [resolvable:$true] %s33
      %39 = dma.hbm_to_vmem [thread:$0]  %s32, 1024, %s34, [#allocation8], 512, 512, 32
    $region9: #{tpu_custom_call.1} parent=1 // pred_fallthru
      _
    // Predicated region
    $region10: #{tpu_custom_call.1} parent=1 // pred_check
      _
    $region11: #{tpu_custom_call.1} parent=1 // pred_check_branch
      %41 = sbr.rel (0) target = $region13
    $region12: #{tpu_custom_call.1} parent=1 // pred_region
      _
    $region13: #{tpu_custom_call.1} parent=1 // pred_fallthru
      _
    // Predicated region
    $region14: #{tpu_custom_call.1} parent=1 // pred_check
      _
    $region15: #{tpu_custom_call.1} parent=1 // pred_check_branch
      %43 = sbr.rel (0) target = $region17
    $region16: #{tpu_custom_call.1} parent=1 // pred_region
      _
    $region17: #{tpu_custom_call.1} parent=1 // pred_fallthru
      _
    // Predicated region
    $region18: #{tpu_custom_call.1} parent=1 // pred_check
      _
    $region19: #{tpu_custom_call.1} parent=1 // pred_check_branch
      %45 = sbr.rel (0) target = $region21
    $region20: #{tpu_custom_call.1} parent=1 // pred_region
      _
    $region21: #{tpu_custom_call.1} parent=1 // pred_fallthru
      _
    // Predicated region
    $region22: #{tpu_custom_call.1} parent=1 // pred_check
      _
    $region23: #{tpu_custom_call.1} parent=1 // pred_check_branch
      %47 = sbr.rel (0) target = $region25
    $region24: #{tpu_custom_call.1} parent=1 // pred_region
      _
    $region25: #{tpu_custom_call.1} parent=1 // pred_fallthru
      _
    // Predicated region
    $region26: #{tpu_custom_call.1} parent=1 // pred_check
      _
    $region27: #{tpu_custom_call.1} parent=1 // pred_check_branch
      %49 = sbr.rel (0) target = $region29
    $region28: #{tpu_custom_call.1} parent=1 // pred_region
      %51 = vsyncadd [#allocation8], 0
      %s52 = sshll.u32 %s6, 4
      %s53 = int_to_ptr.hbm [resolvable:$true] %s52
      %s54 = sshll.u32 [#allocation9], 4
      %s55 = int_to_ptr.vmem [resolvable:$true] %s54
      %60 = dma.hbm_to_vmem [thread:$0]  %s53, 16384, %s55, [#allocation8], 64, 64, 4
    $region29: #{tpu_custom_call.1} parent=1 // pred_fallthru
      _
    // Predicated region
    $region30: #{tpu_custom_call.1} parent=1 // pred_check
      _
    $region31: #{tpu_custom_call.1} parent=1 // pred_check_branch
      %62 = sbr.rel (0) target = $region33
    $region32: #{tpu_custom_call.1} parent=1 // pred_region
      _
    $region33: #{tpu_custom_call.1} parent=1 // pred_fallthru
      _
    // Predicated region
    $region34: #{tpu_custom_call.1} parent=1 // pred_check
      _
    $region35: #{tpu_custom_call.1} parent=1 // pred_check_branch
      %64 = sbr.rel (0) target = $region37
    $region36: #{tpu_custom_call.1} parent=1 // pred_region
      %66 = dma.done [#allocation5], 512
    $region37: #{tpu_custom_call.1} parent=1 // pred_fallthru
      _
    // Predicated region
    $region38: #{tpu_custom_call.1} parent=1 // pred_check
      _
    $region39: #{tpu_custom_call.1} parent=1 // pred_check_branch
      %68 = sbr.rel (0) target = $region41
    $region40: #{tpu_custom_call.1} parent=1 // pred_region
      %70 = dma.done [#allocation8], 1024
    $region41: #{tpu_custom_call.1} parent=1 // pred_fallthru
      _
    // Predicated region
    $region42: #{tpu_custom_call.1} parent=1 // pred_check
      _
    $region43: #{tpu_custom_call.1} parent=1 // pred_check_branch
      %72 = sbr.rel (0) target = $region45
    $region44: #{tpu_custom_call.1} parent=1 // pred_region
      %74 = dma.done [#allocation8], 16384
    $region45: #{tpu_custom_call.1} parent=1 // pred_fallthru
      _
    %v76 = vld [vmem:[#allocation4] sm:$0xff]
    %v77 = vld [vmem:[#allocation4 + $0x8] sm:$0xff]
    %v78 = vld [vmem:[#allocation4 + $0x10] sm:$0xff]
    %v79 = vld [vmem:[#allocation4 + $0x18] sm:$0xff]
    %80 = vrot.lane.b32.xlu0 %v76, 17
    %v81 = vpop.permute.xlu0 %80
    %82 = vrot.lane.b32.xlu0 %v77, 17
    %v83 = vpop.permute.xlu0 %82
    %84 = vrot.lane.b32.xlu0 %v78, 17
    %v85 = vpop.permute.xlu0 %84
    %86 = vrot.lane.b32.xlu0 %v79, 17
    %v87 = vpop.permute.xlu0 %86
    %v88 = vlaneseq
    %v89 = vand.u32 %v88, 127
    %vm90 = vcmp.lt.s32.totalorder %v89, 17
    %v91 = vsel %vm90, %v85, %v87
    %v92 = vsel %vm90, %v83, %v85
    %v93 = vsel %vm90, %v81, %v83
    %v94 = vsel %vm90, %v87, %v81
    %v95 = vld [vmem:[#allocation7] ss:$8 sm:$0xf]
    %v97 = vperm.slane %v95, 0
    %v98 = vperm.slane %v95, 1
    %v99 = vperm.slane %v95, 2
    %v100 = vperm.slane %v95, 3
    %v105 = vmul.f32 %v94, %v97
    %v106 = vmul.f32 %v93, %v98
    %v107 = vmul.f32 %v92, %v99
    %v108 = vmul.f32 %v91, %v100
    %109 = vst [vmem:[#allocation2] sm:$0xff] %v105
    %110 = vst [vmem:[#allocation2 + $0x8] sm:$0xff] %v106
    %111 = vst [vmem:[#allocation2 + $0x10] sm:$0xff] %v107
    %112 = vst [vmem:[#allocation2 + $0x18] sm:$0xff] %v108
    %113 = vrot.lane.b32.xlu0 %v76, 16
    %v114 = vpop.permute.xlu0 %113
    %115 = vrot.lane.b32.xlu0 %v77, 16
    %v116 = vpop.permute.xlu0 %115
    %117 = vrot.lane.b32.xlu0 %v78, 16
    %v118 = vpop.permute.xlu0 %117
    %119 = vrot.lane.b32.xlu0 %v79, 16
    %v120 = vpop.permute.xlu0 %119
    %vm121 = vcmp.lt.s32.totalorder %v89, 16
    %v122 = vsel %vm121, %v118, %v120
    %v123 = vsel %vm121, %v116, %v118
    %v124 = vsel %vm121, %v114, %v116
    %v125 = vsel %vm121, %v120, %v114
    %s126 = scalar_lea.vmem [#allocation7], 1
    %v127 = vld [vmem:[%s126] ss:$8 sm:$0xf]
    %v129 = vperm.slane %v127, 0
    %v130 = vperm.slane %v127, 1
    %v131 = vperm.slane %v127, 2
    %v132 = vperm.slane %v127, 3
    %v137 = vmul.f32 %v125, %v129
    %v138 = vmul.f32 %v124, %v130
    %v139 = vmul.f32 %v123, %v131
    %v140 = vmul.f32 %v122, %v132
    %141 = vst [vmem:[#allocation2 + $0x20] sm:$0xff] %v137
    %142 = vst [vmem:[#allocation2 + $0x28] sm:$0xff] %v138
    %143 = vst [vmem:[#allocation2 + $0x30] sm:$0xff] %v139
    %144 = vst [vmem:[#allocation2 + $0x38] sm:$0xff] %v140
    %145 = vrot.lane.b32.xlu0 %v76, 15
    %v146 = vpop.permute.xlu0 %145
    %147 = vrot.lane.b32.xlu0 %v77, 15
    %v148 = vpop.permute.xlu0 %147
    %149 = vrot.lane.b32.xlu0 %v78, 15
    %v150 = vpop.permute.xlu0 %149
    %151 = vrot.lane.b32.xlu0 %v79, 15
    %v152 = vpop.permute.xlu0 %151
    %vm153 = vcmp.lt.s32.totalorder %v89, 15
    %v154 = vsel %vm153, %v150, %v152
    %v155 = vsel %vm153, %v148, %v150
    %v156 = vsel %vm153, %v146, %v148
    %v157 = vsel %vm153, %v152, %v146
    %s158 = scalar_lea.vmem [#allocation7], 2
    %v159 = vld [vmem:[%s158] ss:$8 sm:$0xf]
    %v161 = vperm.slane %v159, 0
    %v162 = vperm.slane %v159, 1
    %v163 = vperm.slane %v159, 2
    %v164 = vperm.slane %v159, 3
    %v169 = vmul.f32 %v157, %v161
    %v170 = vmul.f32 %v156, %v162
    %v171 = vmul.f32 %v155, %v163
    %v172 = vmul.f32 %v154, %v164
    %173 = vst [vmem:[#allocation2 + $0x40] sm:$0xff] %v169
    %174 = vst [vmem:[#allocation2 + $0x48] sm:$0xff] %v170
    %175 = vst [vmem:[#allocation2 + $0x50] sm:$0xff] %v171
    %176 = vst [vmem:[#allocation2 + $0x58] sm:$0xff] %v172
    %177 = vrot.lane.b32.xlu0 %v76, 1
    %v178 = vpop.permute.xlu0 %177
    %179 = vrot.lane.b32.xlu0 %v77, 1
    %v180 = vpop.permute.xlu0 %179
    %181 = vrot.lane.b32.xlu0 %v78, 1
    %v182 = vpop.permute.xlu0 %181
    %183 = vrot.lane.b32.xlu0 %v79, 1
    %v184 = vpop.permute.xlu0 %183
    %vm185 = vcmp.lt.s32.totalorder %v89, 1
    %v186 = vsel %vm185, %v182, %v184
    %v187 = vsel %vm185, %v180, %v182
    %v188 = vsel %vm185, %v178, %v180
    %v189 = vsel %vm185, %v184, %v178
    %s190 = scalar_lea.vmem [#allocation7], 3
    %v191 = vld [vmem:[%s190] ss:$8 sm:$0xf]
    %v193 = vperm.slane %v191, 0
    %v194 = vperm.slane %v191, 1
    %v195 = vperm.slane %v191, 2
    %v196 = vperm.slane %v191, 3
    %v201 = vmul.f32 %v189, %v193
    %v202 = vmul.f32 %v188, %v194
    %v203 = vmul.f32 %v187, %v195
    %v204 = vmul.f32 %v186, %v196
    %205 = vst [vmem:[#allocation2 + $0x60] sm:$0xff] %v201
    %206 = vst [vmem:[#allocation2 + $0x68] sm:$0xff] %v202
    %207 = vst [vmem:[#allocation2 + $0x70] sm:$0xff] %v203
    %208 = vst [vmem:[#allocation2 + $0x78] sm:$0xff] %v204
    %209 = vst [vmem:[#allocation2 + $0x80] sm:$0xff] %v76
    %210 = vst [vmem:[#allocation2 + $0x88] sm:$0xff] %v77
    %211 = vst [vmem:[#allocation2 + $0x90] sm:$0xff] %v78
    %212 = vst [vmem:[#allocation2 + $0x98] sm:$0xff] %v79
    %213 = vrot.lane.b32.xlu0 %v76, 127
    %v214 = vpop.permute.xlu0 %213
    %215 = vrot.lane.b32.xlu0 %v77, 127
    %v216 = vpop.permute.xlu0 %215
    %217 = vrot.lane.b32.xlu0 %v78, 127
    %v218 = vpop.permute.xlu0 %217
    %219 = vrot.lane.b32.xlu0 %v79, 127
    %v220 = vpop.permute.xlu0 %219
    %vm221 = vcmp.lt.s32.totalorder %v89, 127
    %v222 = vsel %vm221, %v218, %v220
    %v223 = vsel %vm221, %v216, %v218
    %v224 = vsel %vm221, %v214, %v216
    %v225 = vsel %vm221, %v220, %v214
    %s226 = scalar_lea.vmem [#allocation7], 5
    %v227 = vld [vmem:[%s226] ss:$8 sm:$0xf]
    %v229 = vperm.slane %v227, 0
    %v230 = vperm.slane %v227, 1
    %v231 = vperm.slane %v227, 2
    %v232 = vperm.slane %v227, 3
    %v237 = vmul.f32 %v224, %v229
    %v238 = vmul.f32 %v223, %v230
    %v239 = vmul.f32 %v222, %v231
    %v240 = vmul.f32 %v225, %v232
    %241 = vst [vmem:[#allocation2 + $0xa0] sm:$0xff] %v237
    %242 = vst [vmem:[#allocation2 + $0xa8] sm:$0xff] %v238
    %243 = vst [vmem:[#allocation2 + $0xb0] sm:$0xff] %v239
    %244 = vst [vmem:[#allocation2 + $0xb8] sm:$0xff] %v240
    %245 = vrot.lane.b32.xlu0 %v76, 113
    %v246 = vpop.permute.xlu0 %245
    %247 = vrot.lane.b32.xlu0 %v77, 113
    %v248 = vpop.permute.xlu0 %247
    %249 = vrot.lane.b32.xlu0 %v78, 113
    %v250 = vpop.permute.xlu0 %249
    %251 = vrot.lane.b32.xlu0 %v79, 113
    %v252 = vpop.permute.xlu0 %251
    %vm253 = vcmp.lt.s32.totalorder %v89, 113
    %v254 = vsel %vm253, %v250, %v252
    %v255 = vsel %vm253, %v248, %v250
    %v256 = vsel %vm253, %v246, %v248
    %v257 = vsel %vm253, %v252, %v246
    %s258 = scalar_lea.vmem [#allocation7], 6
    %v259 = vld [vmem:[%s258] ss:$8 sm:$0xf]
    %v261 = vperm.slane %v259, 0
    %v262 = vperm.slane %v259, 1
    %v263 = vperm.slane %v259, 2
    %v264 = vperm.slane %v259, 3
    %v269 = vmul.f32 %v256, %v261
    %v270 = vmul.f32 %v255, %v262
    %v271 = vmul.f32 %v254, %v263
    %v272 = vmul.f32 %v257, %v264
    %273 = vst [vmem:[#allocation2 + $0xc0] sm:$0xff] %v269
    %274 = vst [vmem:[#allocation2 + $0xc8] sm:$0xff] %v270
    %275 = vst [vmem:[#allocation2 + $0xd0] sm:$0xff] %v271
    %276 = vst [vmem:[#allocation2 + $0xd8] sm:$0xff] %v272
    %277 = vrot.lane.b32.xlu0 %v76, 112
    %v278 = vpop.permute.xlu0 %277
    %279 = vrot.lane.b32.xlu0 %v77, 112
    %v280 = vpop.permute.xlu0 %279
    %281 = vrot.lane.b32.xlu0 %v78, 112
    %v282 = vpop.permute.xlu0 %281
    %283 = vrot.lane.b32.xlu0 %v79, 112
    %v284 = vpop.permute.xlu0 %283
    %vm285 = vcmp.lt.s32.totalorder %v89, 112
    %v286 = vsel %vm285, %v282, %v284
    %v287 = vsel %vm285, %v280, %v282
    %v288 = vsel %vm285, %v278, %v280
    %v289 = vsel %vm285, %v284, %v278
    %s290 = scalar_lea.vmem [#allocation7], 7
    %v291 = vld [vmem:[%s290] ss:$8 sm:$0xf]
    %v293 = vperm.slane %v291, 0
    %v294 = vperm.slane %v291, 1
    %v295 = vperm.slane %v291, 2
    %v296 = vperm.slane %v291, 3
    %v301 = vmul.f32 %v288, %v293
    %v302 = vmul.f32 %v287, %v294
    %v303 = vmul.f32 %v286, %v295
    %v304 = vmul.f32 %v289, %v296
    %305 = vst [vmem:[#allocation2 + $0xe0] sm:$0xff] %v301
    %306 = vst [vmem:[#allocation2 + $0xe8] sm:$0xff] %v302
    %307 = vst [vmem:[#allocation2 + $0xf0] sm:$0xff] %v303
    %308 = vst [vmem:[#allocation2 + $0xf8] sm:$0xff] %v304
    %309 = vrot.lane.b32.xlu0 %v76, 111
    %v310 = vpop.permute.xlu0 %309
    %311 = vrot.lane.b32.xlu0 %v77, 111
    %v312 = vpop.permute.xlu0 %311
    %313 = vrot.lane.b32.xlu0 %v78, 111
    %v314 = vpop.permute.xlu0 %313
    %315 = vrot.lane.b32.xlu0 %v79, 111
    %v316 = vpop.permute.xlu0 %315
    %vm317 = vcmp.lt.s32.totalorder %v89, 111
    %v318 = vsel %vm317, %v314, %v316
    %v319 = vsel %vm317, %v312, %v314
    %v320 = vsel %vm317, %v310, %v312
    %v321 = vsel %vm317, %v316, %v310
    %s322 = scalar_lea.vmem [#allocation7], 32
    %v323 = vld [vmem:[%s322] ss:$8 sm:$0xf]
    %v325 = vperm.slane %v323, 0
    %v326 = vperm.slane %v323, 1
    %v327 = vperm.slane %v323, 2
    %v328 = vperm.slane %v323, 3
    %v333 = vmul.f32 %v320, %v325
    %v334 = vmul.f32 %v319, %v326
    %v335 = vmul.f32 %v318, %v327
    %v336 = vmul.f32 %v321, %v328
    %337 = vst [vmem:[#allocation2 + $0x100] sm:$0xff] %v333
    %338 = vst [vmem:[#allocation2 + $0x108] sm:$0xff] %v334
    %339 = vst [vmem:[#allocation2 + $0x110] sm:$0xff] %v335
    %340 = vst [vmem:[#allocation2 + $0x118] sm:$0xff] %v336
    %v341 = vld [vmem:[%s2] sm:$0xf]
    %v342 = vld [vmem:[#allocation2] sm:$0xff]
    %v343 = vld [vmem:[#allocation2 + $0x8] sm:$0xff]
    %v344 = vld [vmem:[#allocation2 + $0x10] sm:$0xff]
    %v345 = vld [vmem:[#allocation2 + $0x18] sm:$0xff]
    %v346 = vld [vmem:[#allocation2 + $0x20] sm:$0xff]
    %v347 = vld [vmem:[#allocation2 + $0x28] sm:$0xff]
    %v348 = vld [vmem:[#allocation2 + $0x30] sm:$0xff]
    %v349 = vld [vmem:[#allocation2 + $0x38] sm:$0xff]
    %v350 = vld [vmem:[#allocation2 + $0x40] sm:$0xff]
    %v351 = vld [vmem:[#allocation2 + $0x48] sm:$0xff]
    %v352 = vld [vmem:[#allocation2 + $0x50] sm:$0xff]
    %v353 = vld [vmem:[#allocation2 + $0x58] sm:$0xff]
    %v354 = vld [vmem:[#allocation2 + $0x60] sm:$0xff]
    %v355 = vld [vmem:[#allocation2 + $0x68] sm:$0xff]
    %v356 = vld [vmem:[#allocation2 + $0x70] sm:$0xff]
    %v357 = vld [vmem:[#allocation2 + $0x78] sm:$0xff]
    %v358 = vld [vmem:[#allocation2 + $0x80] sm:$0xff]
    %v359 = vld [vmem:[#allocation2 + $0x88] sm:$0xff]
    %v360 = vld [vmem:[#allocation2 + $0x90] sm:$0xff]
    %v361 = vld [vmem:[#allocation2 + $0x98] sm:$0xff]
    %v362 = vld [vmem:[#allocation2 + $0xa0] sm:$0xff]
    %v363 = vld [vmem:[#allocation2 + $0xa8] sm:$0xff]
    %v364 = vld [vmem:[#allocation2 + $0xb0] sm:$0xff]
    %v365 = vld [vmem:[#allocation2 + $0xb8] sm:$0xff]
    %v366 = vld [vmem:[#allocation2 + $0xc0] sm:$0xff]
    %v367 = vld [vmem:[#allocation2 + $0xc8] sm:$0xff]
    %v368 = vld [vmem:[#allocation2 + $0xd0] sm:$0xff]
    %v369 = vld [vmem:[#allocation2 + $0xd8] sm:$0xff]
    %v370 = vld [vmem:[#allocation2 + $0xe0] sm:$0xff]
    %v371 = vld [vmem:[#allocation2 + $0xe8] sm:$0xff]
    %v372 = vld [vmem:[#allocation2 + $0xf0] sm:$0xff]
    %v373 = vld [vmem:[#allocation2 + $0xf8] sm:$0xff]
    %v374 = vld [vmem:[#allocation2 + $0x100] sm:$0xff]
    %v375 = vld [vmem:[#allocation2 + $0x108] sm:$0xff]
    %v376 = vld [vmem:[#allocation2 + $0x110] sm:$0xff]
    %v377 = vld [vmem:[#allocation2 + $0x118] sm:$0xff]
    %v378 = vpack.c.bf16 %v346, %v342
    %v379 = vpack.c.bf16 %v347, %v343
    %v380 = vpack.c.bf16 %v348, %v344
    %v381 = vpack.c.bf16 %v349, %v345
    %v382 = vpack.c.bf16 %v354, %v350
    %v383 = vpack.c.bf16 %v355, %v351
    %v384 = vpack.c.bf16 %v356, %v352
    %v385 = vpack.c.bf16 %v357, %v353
    %v386 = vpack.c.bf16 %v362, %v358
    %v387 = vpack.c.bf16 %v363, %v359
    %v388 = vpack.c.bf16 %v364, %v360
    %v389 = vpack.c.bf16 %v365, %v361
    %v390 = vpack.c.bf16 %v370, %v366
    %v391 = vpack.c.bf16 %v371, %v367
    %v392 = vpack.c.bf16 %v372, %v368
    %v393 = vpack.c.bf16 %v373, %v369
    %v394 = vpack.c.bf16 %v374, %v374
    %v395 = vpack.c.bf16 %v375, %v375
    %v396 = vpack.c.bf16 %v376, %v376
    %v397 = vpack.c.bf16 %v377, %v377
    %v398 = vld [vmem:[%s3] sm:$0xff]
    %400 = vset.pattern.permute.xlu0 0
    %401 = vperm.xlu0 %400, %v398
    %v402 = vpop.permute.xlu0 %401
    %vm404 = vcmask 588800
    %v406 = vsel %vm404, %v341, 0
    %vm408 = vcmask 1043456
    %v410 = vsel %vm408, %v394, 0
    %v413 = vsel %vm408, %v395, 0
    %v416 = vsel %vm408, %v396, 0
    %v419 = vsel %vm408, %v397, 0
    %421 = vmatpush.bf16.msra.mxu0 0
    %422 = vmatpush.bf16.msra.mxu0 0
    %423 = vmatpush.bf16.msra.mxu0 0
    %424 = vmatpush.bf16.msra.mxu0 %v410
    %425 = vmatpush.bf16.msra.mxu0 %v390
    %426 = vmatpush.bf16.msra.mxu0 %v386
    %427 = vmatpush.bf16.msra.mxu0 %v382
    %428 = vmatpush.bf16.msra.mxu0 %v378
    %429 = vmatmul.bf16.gmra.mxu0 %v406
    %v430 = vpop.f32.mrf.mxu0
    %v431 = vadd.f32 %v402, %v430
    %v432 = vpop.f32.mrf.mxu0
    %433 = vdwg.mxu0
    %434 = vmatpush.bf16.msra.mxu0 0
    %435 = vmatpush.bf16.msra.mxu0 0
    %436 = vmatpush.bf16.msra.mxu0 0
    %437 = vmatpush.bf16.msra.mxu0 %v413
    %438 = vmatpush.bf16.msra.mxu0 %v391
    %439 = vmatpush.bf16.msra.mxu0 %v387
    %440 = vmatpush.bf16.msra.mxu0 %v383
    %441 = vmatpush.bf16.msra.mxu0 %v379
    %442 = vmatmul.bf16.gmra.mxu0 %v406
    %v443 = vpop.f32.mrf.mxu0
    %v444 = vadd.f32 %v402, %v443
    %v445 = vpop.f32.mrf.mxu0
    %446 = vdwg.mxu0
    %447 = vmatpush.bf16.msra.mxu0 0
    %448 = vmatpush.bf16.msra.mxu0 0
    %449 = vmatpush.bf16.msra.mxu0 0
    %450 = vmatpush.bf16.msra.mxu0 %v416
    %451 = vmatpush.bf16.msra.mxu0 %v392
    %452 = vmatpush.bf16.msra.mxu0 %v388
    %453 = vmatpush.bf16.msra.mxu0 %v384
    %454 = vmatpush.bf16.msra.mxu0 %v380
    %455 = vmatmul.bf16.gmra.mxu0 %v406
    %v456 = vpop.f32.mrf.mxu0
    %v457 = vadd.f32 %v402, %v456
    %v458 = vpop.f32.mrf.mxu0
    %459 = vdwg.mxu0
    %460 = vmatpush.bf16.msra.mxu0 0
    %461 = vmatpush.bf16.msra.mxu0 0
    %462 = vmatpush.bf16.msra.mxu0 0
    %463 = vmatpush.bf16.msra.mxu0 %v419
    %464 = vmatpush.bf16.msra.mxu0 %v393
    %465 = vmatpush.bf16.msra.mxu0 %v389
    %466 = vmatpush.bf16.msra.mxu0 %v385
    %467 = vmatpush.bf16.msra.mxu0 %v381
    %468 = vmatmul.bf16.gmra.mxu0 %v406
    %v469 = vpop.f32.mrf.mxu0
    %v470 = vadd.f32 %v402, %v469
    %v471 = vpop.f32.mrf.mxu0
    %472 = vdwg.mxu0
    %v473 = vmax.f32 %v431, 0.0
    %v474 = vmax.f32 %v444, 0.0
    %v475 = vmax.f32 %v457, 0.0
    %v476 = vmax.f32 %v470, 0.0
    %477 = vrot.lane.b32.xlu0 %v473, 17
    %v478 = vpop.permute.xlu0 %477
    %479 = vrot.lane.b32.xlu0 %v474, 17
    %v480 = vpop.permute.xlu0 %479
    %481 = vrot.lane.b32.xlu0 %v475, 17
    %v482 = vpop.permute.xlu0 %481
    %483 = vrot.lane.b32.xlu0 %v476, 17
    %v484 = vpop.permute.xlu0 %483
    %v485 = vsel %vm90, %v482, %v484
    %v486 = vsel %vm90, %v480, %v482
    %v487 = vsel %vm90, %v478, %v480
    %v488 = vsel %vm90, %v484, %v478
    %v489 = vld [vmem:[#allocation7] ss:$8 sm:$0xf]
    %v491 = vperm.slane %v489, 0
    %v492 = vperm.slane %v489, 1
    %v493 = vperm.slane %v489, 2
    %v494 = vperm.slane %v489, 3
    %v499 = vmul.f32 %v488, %v491
    %v500 = vmul.f32 %v487, %v492
    %v501 = vmul.f32 %v486, %v493
    %v502 = vmul.f32 %v485, %v494
    %503 = vst [vmem:[#allocation2] sm:$0xff] %v499
    %504 = vst [vmem:[#allocation2 + $0x8] sm:$0xff] %v500
    %505 = vst [vmem:[#allocation2 + $0x10] sm:$0xff] %v501
    %506 = vst [vmem:[#allocation2 + $0x18] sm:$0xff] %v502
    %507 = vrot.lane.b32.xlu0 %v473, 16
    %v508 = vpop.permute.xlu0 %507
    %509 = vrot.lane.b32.xlu0 %v474, 16
    %v510 = vpop.permute.xlu0 %509
    %511 = vrot.lane.b32.xlu0 %v475, 16
    %v512 = vpop.permute.xlu0 %511
    %513 = vrot.lane.b32.xlu0 %v476, 16
    %v514 = vpop.permute.xlu0 %513
    %v515 = vsel %vm121, %v512, %v514
    %v516 = vsel %vm121, %v510, %v512
    %v517 = vsel %vm121, %v508, %v510
    %v518 = vsel %vm121, %v514, %v508
    %v519 = vld [vmem:[%s126] ss:$8 sm:$0xf]
    %v521 = vperm.slane %v519, 0
    %v522 = vperm.slane %v519, 1
    %v523 = vperm.slane %v519, 2
    %v524 = vperm.slane %v519, 3
    %v529 = vmul.f32 %v518, %v521
    %v530 = vmul.f32 %v517, %v522
    %v531 = vmul.f32 %v516, %v523
    %v532 = vmul.f32 %v515, %v524
    %533 = vst [vmem:[#allocation2 + $0x20] sm:$0xff] %v529
    %534 = vst [vmem:[#allocation2 + $0x28] sm:$0xff] %v530
    %535 = vst [vmem:[#allocation2 + $0x30] sm:$0xff] %v531
    %536 = vst [vmem:[#allocation2 + $0x38] sm:$0xff] %v532
    %537 = vrot.lane.b32.xlu0 %v473, 15
    %v538 = vpop.permute.xlu0 %537
    %539 = vrot.lane.b32.xlu0 %v474, 15
    %v540 = vpop.permute.xlu0 %539
    %541 = vrot.lane.b32.xlu0 %v475, 15
    %v542 = vpop.permute.xlu0 %541
    %543 = vrot.lane.b32.xlu0 %v476, 15
    %v544 = vpop.permute.xlu0 %543
    %v545 = vsel %vm153, %v542, %v544
    %v546 = vsel %vm153, %v540, %v542
    %v547 = vsel %vm153, %v538, %v540
    %v548 = vsel %vm153, %v544, %v538
    %v549 = vld [vmem:[%s158] ss:$8 sm:$0xf]
    %v551 = vperm.slane %v549, 0
    %v552 = vperm.slane %v549, 1
    %v553 = vperm.slane %v549, 2
    %v554 = vperm.slane %v549, 3
    %v559 = vmul.f32 %v548, %v551
    %v560 = vmul.f32 %v547, %v552
    %v561 = vmul.f32 %v546, %v553
    %v562 = vmul.f32 %v545, %v554
    %563 = vst [vmem:[#allocation2 + $0x40] sm:$0xff] %v559
    %564 = vst [vmem:[#allocation2 + $0x48] sm:$0xff] %v560
    %565 = vst [vmem:[#allocation2 + $0x50] sm:$0xff] %v561
    %566 = vst [vmem:[#allocation2 + $0x58] sm:$0xff] %v562
    %567 = vrot.lane.b32.xlu0 %v473, 1
    %v568 = vpop.permute.xlu0 %567
    %569 = vrot.lane.b32.xlu0 %v474, 1
    %v570 = vpop.permute.xlu0 %569
    %571 = vrot.lane.b32.xlu0 %v475, 1
    %v572 = vpop.permute.xlu0 %571
    %573 = vrot.lane.b32.xlu0 %v476, 1
    %v574 = vpop.permute.xlu0 %573
    %v575 = vsel %vm185, %v572, %v574
    %v576 = vsel %vm185, %v570, %v572
    %v577 = vsel %vm185, %v568, %v570
    %v578 = vsel %vm185, %v574, %v568
    %v579 = vld [vmem:[%s190] ss:$8 sm:$0xf]
    %v581 = vperm.slane %v579, 0
    %v582 = vperm.slane %v579, 1
    %v583 = vperm.slane %v579, 2
    %v584 = vperm.slane %v579, 3
    %v589 = vmul.f32 %v578, %v581
    %v590 = vmul.f32 %v577, %v582
    %v591 = vmul.f32 %v576, %v583
    %v592 = vmul.f32 %v575, %v584
    %593 = vst [vmem:[#allocation2 + $0x60] sm:$0xff] %v589
    %594 = vst [vmem:[#allocation2 + $0x68] sm:$0xff] %v590
    %595 = vst [vmem:[#allocation2 + $0x70] sm:$0xff] %v591
    %596 = vst [vmem:[#allocation2 + $0x78] sm:$0xff] %v592
    %597 = vst [vmem:[#allocation2 + $0x80] sm:$0xff] %v473
    %598 = vst [vmem:[#allocation2 + $0x88] sm:$0xff] %v474
    %599 = vst [vmem:[#allocation2 + $0x90] sm:$0xff] %v475
    %600 = vst [vmem:[#allocation2 + $0x98] sm:$0xff] %v476
    %601 = vrot.lane.b32.xlu0 %v473, 127
    %v602 = vpop.permute.xlu0 %601
    %603 = vrot.lane.b32.xlu0 %v474, 127
    %v604 = vpop.permute.xlu0 %603
    %605 = vrot.lane.b32.xlu0 %v475, 127
    %v606 = vpop.permute.xlu0 %605
    %607 = vrot.lane.b32.xlu0 %v476, 127
    %v608 = vpop.permute.xlu0 %607
    %v609 = vsel %vm221, %v606, %v608
    %v610 = vsel %vm221, %v604, %v606
    %v611 = vsel %vm221, %v602, %v604
    %v612 = vsel %vm221, %v608, %v602
    %v613 = vld [vmem:[%s226] ss:$8 sm:$0xf]
    %v615 = vperm.slane %v613, 0
    %v616 = vperm.slane %v613, 1
    %v617 = vperm.slane %v613, 2
    %v618 = vperm.slane %v613, 3
    %v623 = vmul.f32 %v611, %v615
    %v624 = vmul.f32 %v610, %v616
    %v625 = vmul.f32 %v609, %v617
    %v626 = vmul.f32 %v612, %v618
    %627 = vst [vmem:[#allocation2 + $0xa0] sm:$0xff] %v623
    %628 = vst [vmem:[#allocation2 + $0xa8] sm:$0xff] %v624
    %629 = vst [vmem:[#allocation2 + $0xb0] sm:$0xff] %v625
    %630 = vst [vmem:[#allocation2 + $0xb8] sm:$0xff] %v626
    %631 = vrot.lane.b32.xlu0 %v473, 113
    %v632 = vpop.permute.xlu0 %631
    %633 = vrot.lane.b32.xlu0 %v474, 113
    %v634 = vpop.permute.xlu0 %633
    %635 = vrot.lane.b32.xlu0 %v475, 113
    %v636 = vpop.permute.xlu0 %635
    %637 = vrot.lane.b32.xlu0 %v476, 113
    %v638 = vpop.permute.xlu0 %637
    %v639 = vsel %vm253, %v636, %v638
    %v640 = vsel %vm253, %v634, %v636
    %v641 = vsel %vm253, %v632, %v634
    %v642 = vsel %vm253, %v638, %v632
    %v643 = vld [vmem:[%s258] ss:$8 sm:$0xf]
    %v645 = vperm.slane %v643, 0
    %v646 = vperm.slane %v643, 1
    %v647 = vperm.slane %v643, 2
    %v648 = vperm.slane %v643, 3
    %v653 = vmul.f32 %v641, %v645
    %v654 = vmul.f32 %v640, %v646
    %v655 = vmul.f32 %v639, %v647
    %v656 = vmul.f32 %v642, %v648
    %657 = vst [vmem:[#allocation2 + $0xc0] sm:$0xff] %v653
    %658 = vst [vmem:[#allocation2 + $0xc8] sm:$0xff] %v654
    %659 = vst [vmem:[#allocation2 + $0xd0] sm:$0xff] %v655
    %660 = vst [vmem:[#allocation2 + $0xd8] sm:$0xff] %v656
    %661 = vrot.lane.b32.xlu0 %v473, 112
    %v662 = vpop.permute.xlu0 %661
    %663 = vrot.lane.b32.xlu0 %v474, 112
    %v664 = vpop.permute.xlu0 %663
    %665 = vrot.lane.b32.xlu0 %v475, 112
    %v666 = vpop.permute.xlu0 %665
    %667 = vrot.lane.b32.xlu0 %v476, 112
    %v668 = vpop.permute.xlu0 %667
    %v669 = vsel %vm285, %v666, %v668
    %v670 = vsel %vm285, %v664, %v666
    %v671 = vsel %vm285, %v662, %v664
    %v672 = vsel %vm285, %v668, %v662
    %v673 = vld [vmem:[%s290] ss:$8 sm:$0xf]
    %v675 = vperm.slane %v673, 0
    %v676 = vperm.slane %v673, 1
    %v677 = vperm.slane %v673, 2
    %v678 = vperm.slane %v673, 3
    %v683 = vmul.f32 %v671, %v675
    %v684 = vmul.f32 %v670, %v676
    %v685 = vmul.f32 %v669, %v677
    %v686 = vmul.f32 %v672, %v678
    %687 = vst [vmem:[#allocation2 + $0xe0] sm:$0xff] %v683
    %688 = vst [vmem:[#allocation2 + $0xe8] sm:$0xff] %v684
    %689 = vst [vmem:[#allocation2 + $0xf0] sm:$0xff] %v685
    %690 = vst [vmem:[#allocation2 + $0xf8] sm:$0xff] %v686
    %691 = vrot.lane.b32.xlu0 %v473, 111
    %v692 = vpop.permute.xlu0 %691
    %693 = vrot.lane.b32.xlu0 %v474, 111
    %v694 = vpop.permute.xlu0 %693
    %695 = vrot.lane.b32.xlu0 %v475, 111
    %v696 = vpop.permute.xlu0 %695
    %697 = vrot.lane.b32.xlu0 %v476, 111
    %v698 = vpop.permute.xlu0 %697
    %v699 = vsel %vm317, %v696, %v698
    %v700 = vsel %vm317, %v694, %v696
    %v701 = vsel %vm317, %v692, %v694
    %v702 = vsel %vm317, %v698, %v692
    %v703 = vld [vmem:[%s322] ss:$8 sm:$0xf]
    %v705 = vperm.slane %v703, 0
    %v706 = vperm.slane %v703, 1
    %v707 = vperm.slane %v703, 2
    %v708 = vperm.slane %v703, 3
    %v713 = vmul.f32 %v701, %v705
    %v714 = vmul.f32 %v700, %v706
    %v715 = vmul.f32 %v699, %v707
    %v716 = vmul.f32 %v702, %v708
    %717 = vst [vmem:[#allocation2 + $0x100] sm:$0xff] %v713
    %718 = vst [vmem:[#allocation2 + $0x108] sm:$0xff] %v714
    %719 = vst [vmem:[#allocation2 + $0x110] sm:$0xff] %v715
    %720 = vst [vmem:[#allocation2 + $0x118] sm:$0xff] %v716
    %v721 = vld [vmem:[%s4] sm:$0xf]
    %v722 = vld [vmem:[#allocation2] sm:$0xff]
    %v723 = vld [vmem:[#allocation2 + $0x8] sm:$0xff]
    %v724 = vld [vmem:[#allocation2 + $0x10] sm:$0xff]
    %v725 = vld [vmem:[#allocation2 + $0x18] sm:$0xff]
    %v726 = vld [vmem:[#allocation2 + $0x20] sm:$0xff]
    %v727 = vld [vmem:[#allocation2 + $0x28] sm:$0xff]
    %v728 = vld [vmem:[#allocation2 + $0x30] sm:$0xff]
    %v729 = vld [vmem:[#allocation2 + $0x38] sm:$0xff]
    %v730 = vld [vmem:[#allocation2 + $0x40] sm:$0xff]
    %v731 = vld [vmem:[#allocation2 + $0x48] sm:$0xff]
    %v732 = vld [vmem:[#allocation2 + $0x50] sm:$0xff]
    %v733 = vld [vmem:[#allocation2 + $0x58] sm:$0xff]
    %v734 = vld [vmem:[#allocation2 + $0x60] sm:$0xff]
    %v735 = vld [vmem:[#allocation2 + $0x68] sm:$0xff]
    %v736 = vld [vmem:[#allocation2 + $0x70] sm:$0xff]
    %v737 = vld [vmem:[#allocation2 + $0x78] sm:$0xff]
    %v738 = vld [vmem:[#allocation2 + $0x80] sm:$0xff]
    %v739 = vld [vmem:[#allocation2 + $0x88] sm:$0xff]
    %v740 = vld [vmem:[#allocation2 + $0x90] sm:$0xff]
    %v741 = vld [vmem:[#allocation2 + $0x98] sm:$0xff]
    %v742 = vld [vmem:[#allocation2 + $0xa0] sm:$0xff]
    %v743 = vld [vmem:[#allocation2 + $0xa8] sm:$0xff]
    %v744 = vld [vmem:[#allocation2 + $0xb0] sm:$0xff]
    %v745 = vld [vmem:[#allocation2 + $0xb8] sm:$0xff]
    %v746 = vld [vmem:[#allocation2 + $0xc0] sm:$0xff]
    %v747 = vld [vmem:[#allocation2 + $0xc8] sm:$0xff]
    %v748 = vld [vmem:[#allocation2 + $0xd0] sm:$0xff]
    %v749 = vld [vmem:[#allocation2 + $0xd8] sm:$0xff]
    %v750 = vld [vmem:[#allocation2 + $0xe0] sm:$0xff]
    %v751 = vld [vmem:[#allocation2 + $0xe8] sm:$0xff]
    %v752 = vld [vmem:[#allocation2 + $0xf0] sm:$0xff]
    %v753 = vld [vmem:[#allocation2 + $0xf8] sm:$0xff]
    %v754 = vld [vmem:[#allocation2 + $0x100] sm:$0xff]
    %v755 = vld [vmem:[#allocation2 + $0x108] sm:$0xff]
    %v756 = vld [vmem:[#allocation2 + $0x110] sm:$0xff]
    %v757 = vld [vmem:[#allocation2 + $0x118] sm:$0xff]
    %v758 = vpack.c.bf16 %v726, %v722
    %v759 = vpack.c.bf16 %v727, %v723
    %v760 = vpack.c.bf16 %v728, %v724
    %v761 = vpack.c.bf16 %v729, %v725
    %v762 = vpack.c.bf16 %v734, %v730
    %v763 = vpack.c.bf16 %v735, %v731
    %v764 = vpack.c.bf16 %v736, %v732
    %v765 = vpack.c.bf16 %v737, %v733
    %v766 = vpack.c.bf16 %v742, %v738
    %v767 = vpack.c.bf16 %v743, %v739
    %v768 = vpack.c.bf16 %v744, %v740
    %v769 = vpack.c.bf16 %v745, %v741
    %v770 = vpack.c.bf16 %v750, %v746
    %v771 = vpack.c.bf16 %v751, %v747
    %v772 = vpack.c.bf16 %v752, %v748
    %v773 = vpack.c.bf16 %v753, %v749
    %v774 = vpack.c.bf16 %v754, %v754
    %v775 = vpack.c.bf16 %v755, %v755
    %v776 = vpack.c.bf16 %v756, %v756
    %v777 = vpack.c.bf16 %v757, %v757
    %v778 = vld [vmem:[%s5] sm:$0xff]
    %780 = vset.pattern.permute.xlu0 0
    %781 = vperm.xlu0 %780, %v778
    %v782 = vpop.permute.xlu0 %781
    %v785 = vsel %vm404, %v721, 0
    %v788 = vsel %vm408, %v774, 0
    %v791 = vsel %vm408, %v775, 0
    %v794 = vsel %vm408, %v776, 0
    %v797 = vsel %vm408, %v777, 0
    %799 = vmatpush.bf16.msra.mxu0 0
    %800 = vmatpush.bf16.msra.mxu0 0
    %801 = vmatpush.bf16.msra.mxu0 0
    %802 = vmatpush.bf16.msra.mxu0 %v788
    %803 = vmatpush.bf16.msra.mxu0 %v770
    %804 = vmatpush.bf16.msra.mxu0 %v766
    %805 = vmatpush.bf16.msra.mxu0 %v762
    %806 = vmatpush.bf16.msra.mxu0 %v758
    %807 = vmatmul.bf16.gmra.mxu0 %v785
    %v808 = vpop.f32.mrf.mxu0
    %v809 = vadd.f32 %v782, %v808
    %v810 = vpop.f32.mrf.mxu0
    %811 = vdwg.mxu0
    %812 = vmatpush.bf16.msra.mxu0 0
    %813 = vmatpush.bf16.msra.mxu0 0
    %814 = vmatpush.bf16.msra.mxu0 0
    %815 = vmatpush.bf16.msra.mxu0 %v791
    %816 = vmatpush.bf16.msra.mxu0 %v771
    %817 = vmatpush.bf16.msra.mxu0 %v767
    %818 = vmatpush.bf16.msra.mxu0 %v763
    %819 = vmatpush.bf16.msra.mxu0 %v759
    %820 = vmatmul.bf16.gmra.mxu0 %v785
    %v821 = vpop.f32.mrf.mxu0
    %v822 = vadd.f32 %v782, %v821
    %v823 = vpop.f32.mrf.mxu0
    %824 = vdwg.mxu0
    %825 = vmatpush.bf16.msra.mxu0 0
    %826 = vmatpush.bf16.msra.mxu0 0
    %827 = vmatpush.bf16.msra.mxu0 0
    %828 = vmatpush.bf16.msra.mxu0 %v794
    %829 = vmatpush.bf16.msra.mxu0 %v772
    %830 = vmatpush.bf16.msra.mxu0 %v768
    %831 = vmatpush.bf16.msra.mxu0 %v764
    %832 = vmatpush.bf16.msra.mxu0 %v760
    %833 = vmatmul.bf16.gmra.mxu0 %v785
    %v834 = vpop.f32.mrf.mxu0
    %v835 = vadd.f32 %v782, %v834
    %v836 = vpop.f32.mrf.mxu0
    %837 = vdwg.mxu0
    %838 = vmatpush.bf16.msra.mxu0 0
    %839 = vmatpush.bf16.msra.mxu0 0
    %840 = vmatpush.bf16.msra.mxu0 0
    %841 = vmatpush.bf16.msra.mxu0 %v797
    %842 = vmatpush.bf16.msra.mxu0 %v773
    %843 = vmatpush.bf16.msra.mxu0 %v769
    %844 = vmatpush.bf16.msra.mxu0 %v765
    %845 = vmatpush.bf16.msra.mxu0 %v761
    %846 = vmatmul.bf16.gmra.mxu0 %v785
    %v847 = vpop.f32.mrf.mxu0
    %v848 = vadd.f32 %v782, %v847
    %v849 = vpop.f32.mrf.mxu0
    %850 = vdwg.mxu0
    %v851 = vmax.f32 %v809, 0.0
    %v852 = vmax.f32 %v822, 0.0
    %v853 = vmax.f32 %v835, 0.0
    %v854 = vmax.f32 %v848, 0.0
    %v857 = vrot.slane %v852, 7
    %vm858 = vcmask 1040384
    %v859 = vsel %vm858, %v851, %v857
    %vm860 = vcmask 1041409
    %v861 = vsel %vm860, %v851, %v857
    %v862 = vrot.slane %v861, 1
    %vm863 = vcmask 1042434
    %v864 = vsel %vm863, %v851, %v857
    %v865 = vrot.slane %v864, 2
    %vm866 = vcmask 1043459
    %v867 = vsel %vm866, %v851, %v857
    %v868 = vrot.slane %v867, 3
    %vm869 = vcmask 1044484
    %v870 = vsel %vm869, %v851, %v857
    %v871 = vrot.slane %v870, 4
    %vm872 = vcmask 1045509
    %v873 = vsel %vm872, %v851, %v857
    %v874 = vrot.slane %v873, 5
    %vm875 = vcmask 1046534
    %v876 = vsel %vm875, %v851, %v857
    %v877 = vrot.slane %v876, 6
    %vm878 = vcmask 1046528
    %v879 = vsel %vm878, %v857, %v851
    %v880 = vrot.slane %v879, 7
    %v889 = vlaneseq
    %vm890 = vcmp.ge.s32.totalorder %v889, 0
    %vm891 = vcmp.lt.s32.totalorder %v889, 256
    %vm892 = vmand %vm890, %vm891
    %893 = vst.msk [vmem:[#allocation3] ss:$2 sm:$0x3] %vm892, %v859
    %s894 = scalar_lea.vmem [#allocation3], 4
    %895 = vst.msk [vmem:[%s894] ss:$2 sm:$0x3] %vm892, %v862
    %s896 = scalar_lea.vmem [#allocation3], 8
    %897 = vst.msk [vmem:[%s896] ss:$2 sm:$0x3] %vm892, %v865
    %s898 = scalar_lea.vmem [#allocation3], 12
    %899 = vst.msk [vmem:[%s898] ss:$2 sm:$0x3] %vm892, %v868
    %s900 = scalar_lea.vmem [#allocation3], 16
    %901 = vst.msk [vmem:[%s900] ss:$2 sm:$0x3] %vm892, %v871
    %s902 = scalar_lea.vmem [#allocation3], 20
    %903 = vst.msk [vmem:[%s902] ss:$2 sm:$0x3] %vm892, %v874
    %s904 = scalar_lea.vmem [#allocation3], 24
    %905 = vst.msk [vmem:[%s904] ss:$2 sm:$0x3] %vm892, %v877
    %s906 = scalar_lea.vmem [#allocation3], 28
    %907 = vst.msk [vmem:[%s906] ss:$2 sm:$0x3] %vm892, %v880
    %v910 = vrot.slane %v854, 7
    %v911 = vsel %vm858, %v853, %v910
    %v912 = vsel %vm860, %v853, %v910
    %v913 = vrot.slane %v912, 1
    %v914 = vsel %vm863, %v853, %v910
    %v915 = vrot.slane %v914, 2
    %v916 = vsel %vm866, %v853, %v910
    %v917 = vrot.slane %v916, 3
    %v918 = vsel %vm869, %v853, %v910
    %v919 = vrot.slane %v918, 4
    %v920 = vsel %vm872, %v853, %v910
    %v921 = vrot.slane %v920, 5
    %v922 = vsel %vm875, %v853, %v910
    %v923 = vrot.slane %v922, 6
    %v924 = vsel %vm878, %v910, %v853
    %v925 = vrot.slane %v924, 7
    %s934 = scalar_lea.vmem [#allocation3], 1
    %935 = vst.msk [vmem:[%s934] ss:$2 sm:$0x3] %vm892, %v911
    %s936 = scalar_lea.vmem [#allocation3], 5
    %937 = vst.msk [vmem:[%s936] ss:$2 sm:$0x3] %vm892, %v913
    %s938 = scalar_lea.vmem [#allocation3], 9
    %939 = vst.msk [vmem:[%s938] ss:$2 sm:$0x3] %vm892, %v915
    %s940 = scalar_lea.vmem [#allocation3], 13
    %941 = vst.msk [vmem:[%s940] ss:$2 sm:$0x3] %vm892, %v917
    %s942 = scalar_lea.vmem [#allocation3], 17
    %943 = vst.msk [vmem:[%s942] ss:$2 sm:$0x3] %vm892, %v919
    %s944 = scalar_lea.vmem [#allocation3], 21
    %945 = vst.msk [vmem:[%s944] ss:$2 sm:$0x3] %vm892, %v921
    %s946 = scalar_lea.vmem [#allocation3], 25
    %947 = vst.msk [vmem:[%s946] ss:$2 sm:$0x3] %vm892, %v923
    %s948 = scalar_lea.vmem [#allocation3], 29
    %949 = vst.msk [vmem:[%s948] ss:$2 sm:$0x3] %vm892, %v925
    %v950 = vld [vmem:[#allocation3] sm:$0xf]
    %v951 = vld [vmem:[#allocation3 + $0x4] sm:$0xf]
    %v952 = vld [vmem:[#allocation3 + $0x8] sm:$0xf]
    %v953 = vld [vmem:[#allocation3 + $0xc] sm:$0xf]
    %v954 = vld [vmem:[#allocation3 + $0x10] sm:$0xf]
    %v955 = vld [vmem:[#allocation3 + $0x14] sm:$0xf]
    %v956 = vld [vmem:[#allocation3 + $0x18] sm:$0xf]
    %v957 = vld [vmem:[#allocation3 + $0x1c] sm:$0xf]
    %966 = vst [vmem:[#allocation1] ss:$4 sm:$0xff] %v950
    %v967 = vld.sshfl [vmem:[#allocation1] sm:$0xff pattern:$0x73625140]
    %v968 = vld.sshfl [vmem:[#allocation1 + $0x8] sm:$0xff pattern:$0x73625140]
    %s969 = scalar_lea.vmem [#allocation1], 32
    %970 = vst [vmem:[%s969] ss:$4 sm:$0xff] %v951
    %v971 = vld.sshfl [vmem:[#allocation1 + $0x20] sm:$0xff pattern:$0x73625140]
    %v972 = vld.sshfl [vmem:[#allocation1 + $0x28] sm:$0xff pattern:$0x73625140]
    %973 = vst [vmem:[#allocation1] ss:$4 sm:$0xff] %v952
    %v974 = vld.sshfl [vmem:[#allocation1] sm:$0xff pattern:$0x73625140]
    %v975 = vld.sshfl [vmem:[#allocation1 + $0x8] sm:$0xff pattern:$0x73625140]
    %976 = vst [vmem:[%s969] ss:$4 sm:$0xff] %v953
    %v977 = vld.sshfl [vmem:[#allocation1 + $0x20] sm:$0xff pattern:$0x73625140]
    %v978 = vld.sshfl [vmem:[#allocation1 + $0x28] sm:$0xff pattern:$0x73625140]
    %979 = vst [vmem:[#allocation1] ss:$4 sm:$0xff] %v954
    %v980 = vld.sshfl [vmem:[#allocation1] sm:$0xff pattern:$0x73625140]
    %v981 = vld.sshfl [vmem:[#allocation1 + $0x8] sm:$0xff pattern:$0x73625140]
    %982 = vst [vmem:[%s969] ss:$4 sm:$0xff] %v955
    %v983 = vld.sshfl [vmem:[#allocation1 + $0x20] sm:$0xff pattern:$0x73625140]
    %v984 = vld.sshfl [vmem:[#allocation1 + $0x28] sm:$0xff pattern:$0x73625140]
    %985 = vst [vmem:[#allocation1] ss:$4 sm:$0xff] %v956
    %v986 = vld.sshfl [vmem:[#allocation1] sm:$0xff pattern:$0x73625140]
    %v987 = vld.sshfl [vmem:[#allocation1 + $0x8] sm:$0xff pattern:$0x73625140]
    %988 = vst [vmem:[%s969] ss:$4 sm:$0xff] %v957
    %v989 = vld.sshfl [vmem:[#allocation1 + $0x20] sm:$0xff pattern:$0x73625140]
    %v990 = vld.sshfl [vmem:[#allocation1 + $0x28] sm:$0xff pattern:$0x73625140]
    %v1007 = vpack.c.bf16 %v968, %v967
    %v1008 = vpack.c.bf16 %v972, %v971
    %v1009 = vpack.c.bf16 %v975, %v974
    %v1010 = vpack.c.bf16 %v978, %v977
    %v1011 = vpack.c.bf16 %v981, %v980
    %v1012 = vpack.c.bf16 %v984, %v983
    %v1013 = vpack.c.bf16 %v987, %v986
    %v1014 = vpack.c.bf16 %v990, %v989
    %v1015 = vld [vmem:[#allocation9] sm:$0xf]
    %v1016 = vld [vmem:[#allocation9 + $0x4] sm:$0xf]
    %v1017 = vld [vmem:[#allocation9 + $0x8] sm:$0xf]
    %v1018 = vld [vmem:[#allocation9 + $0xc] sm:$0xf]
    %v1019 = vld [vmem:[#allocation9 + $0x10] sm:$0xf]
    %v1020 = vld [vmem:[#allocation9 + $0x14] sm:$0xf]
    %v1021 = vld [vmem:[#allocation9 + $0x18] sm:$0xf]
    %v1022 = vld [vmem:[#allocation9 + $0x1c] sm:$0xf]
    %v1023 = vld [vmem:[#allocation9 + $0x20] sm:$0xf]
    %v1024 = vld [vmem:[#allocation9 + $0x24] sm:$0xf]
    %v1025 = vld [vmem:[#allocation9 + $0x28] sm:$0xf]
    %v1026 = vld [vmem:[#allocation9 + $0x2c] sm:$0xf]
    %v1027 = vld [vmem:[#allocation9 + $0x30] sm:$0xf]
    %v1028 = vld [vmem:[#allocation9 + $0x34] sm:$0xf]
    %v1029 = vld [vmem:[#allocation9 + $0x38] sm:$0xf]
    %v1030 = vld [vmem:[#allocation9 + $0x3c] sm:$0xf]
    %v1031 = vld [vmem:[#allocation9 + $0x40] sm:$0xf]
    %v1032 = vld [vmem:[#allocation9 + $0x44] sm:$0xf]
    %v1033 = vld [vmem:[#allocation9 + $0x48] sm:$0xf]
    %v1034 = vld [vmem:[#allocation9 + $0x4c] sm:$0xf]
    %v1035 = vld [vmem:[#allocation9 + $0x50] sm:$0xf]
    %v1036 = vld [vmem:[#allocation9 + $0x54] sm:$0xf]
    %v1037 = vld [vmem:[#allocation9 + $0x58] sm:$0xf]
    %v1038 = vld [vmem:[#allocation9 + $0x5c] sm:$0xf]
    %v1039 = vld [vmem:[#allocation9 + $0x60] sm:$0xf]
    %v1040 = vld [vmem:[#allocation9 + $0x64] sm:$0xf]
    %v1041 = vld [vmem:[#allocation9 + $0x68] sm:$0xf]
    %v1042 = vld [vmem:[#allocation9 + $0x6c] sm:$0xf]
    %v1043 = vld [vmem:[#allocation9 + $0x70] sm:$0xf]
    %v1044 = vld [vmem:[#allocation9 + $0x74] sm:$0xf]
    %v1045 = vld [vmem:[#allocation9 + $0x78] sm:$0xf]
    %v1046 = vld [vmem:[#allocation9 + $0x7c] sm:$0xf]
    %v1047 = vld [vmem:[#allocation9 + $0x80] sm:$0xf]
    %v1048 = vld [vmem:[#allocation9 + $0x84] sm:$0xf]
    %v1049 = vld [vmem:[#allocation9 + $0x88] sm:$0xf]
    %v1050 = vld [vmem:[#allocation9 + $0x8c] sm:$0xf]
    %v1051 = vld [vmem:[#allocation9 + $0x90] sm:$0xf]
    %v1052 = vld [vmem:[#allocation9 + $0x94] sm:$0xf]
    %v1053 = vld [vmem:[#allocation9 + $0x98] sm:$0xf]
    %v1054 = vld [vmem:[#allocation9 + $0x9c] sm:$0xf]
    %v1055 = vld [vmem:[#allocation9 + $0xa0] sm:$0xf]
    %v1056 = vld [vmem:[#allocation9 + $0xa4] sm:$0xf]
    %v1057 = vld [vmem:[#allocation9 + $0xa8] sm:$0xf]
    %v1058 = vld [vmem:[#allocation9 + $0xac] sm:$0xf]
    %v1059 = vld [vmem:[#allocation9 + $0xb0] sm:$0xf]
    %v1060 = vld [vmem:[#allocation9 + $0xb4] sm:$0xf]
    %v1061 = vld [vmem:[#allocation9 + $0xb8] sm:$0xf]
    %v1062 = vld [vmem:[#allocation9 + $0xbc] sm:$0xf]
    %v1063 = vld [vmem:[#allocation9 + $0xc0] sm:$0xf]
    %v1064 = vld [vmem:[#allocation9 + $0xc4] sm:$0xf]
    %v1065 = vld [vmem:[#allocation9 + $0xc8] sm:$0xf]
    %v1066 = vld [vmem:[#allocation9 + $0xcc] sm:$0xf]
    %v1067 = vld [vmem:[#allocation9 + $0xd0] sm:$0xf]
    %v1068 = vld [vmem:[#allocation9 + $0xd4] sm:$0xf]
    %v1069 = vld [vmem:[#allocation9 + $0xd8] sm:$0xf]
    %v1070 = vld [vmem:[#allocation9 + $0xdc] sm:$0xf]
    %v1071 = vld [vmem:[#allocation9 + $0xe0] sm:$0xf]
    %v1072 = vld [vmem:[#allocation9 + $0xe4] sm:$0xf]
    %v1073 = vld [vmem:[#allocation9 + $0xe8] sm:$0xf]
    %v1074 = vld [vmem:[#allocation9 + $0xec] sm:$0xf]
    %v1075 = vld [vmem:[#allocation9 + $0xf0] sm:$0xf]
    %v1076 = vld [vmem:[#allocation9 + $0xf4] sm:$0xf]
    %v1077 = vld [vmem:[#allocation9 + $0xf8] sm:$0xf]
    %v1078 = vld [vmem:[#allocation9 + $0xfc] sm:$0xf]
    %v1079 = vld [vmem:[#allocation9 + $0x100] sm:$0xf]
    %v1080 = vld [vmem:[#allocation9 + $0x104] sm:$0xf]
    %v1081 = vld [vmem:[#allocation9 + $0x108] sm:$0xf]
    %v1082 = vld [vmem:[#allocation9 + $0x10c] sm:$0xf]
    %v1083 = vld [vmem:[#allocation9 + $0x110] sm:$0xf]
    %v1084 = vld [vmem:[#allocation9 + $0x114] sm:$0xf]
    %v1085 = vld [vmem:[#allocation9 + $0x118] sm:$0xf]
    %v1086 = vld [vmem:[#allocation9 + $0x11c] sm:$0xf]
    %v1087 = vld [vmem:[#allocation9 + $0x120] sm:$0xf]
    %v1088 = vld [vmem:[#allocation9 + $0x124] sm:$0xf]
    %v1089 = vld [vmem:[#allocation9 + $0x128] sm:$0xf]
    %v1090 = vld [vmem:[#allocation9 + $0x12c] sm:$0xf]
    %v1091 = vld [vmem:[#allocation9 + $0x130] sm:$0xf]
    %v1092 = vld [vmem:[#allocation9 + $0x134] sm:$0xf]
    %v1093 = vld [vmem:[#allocation9 + $0x138] sm:$0xf]
    %v1094 = vld [vmem:[#allocation9 + $0x13c] sm:$0xf]
    %v1095 = vld [vmem:[#allocation9 + $0x140] sm:$0xf]
    %v1096 = vld [vmem:[#allocation9 + $0x144] sm:$0xf]
    %v1097 = vld [vmem:[#allocation9 + $0x148] sm:$0xf]
    %v1098 = vld [vmem:[#allocation9 + $0x14c] sm:$0xf]
    %v1099 = vld [vmem:[#allocation9 + $0x150] sm:$0xf]
    %v1100 = vld [vmem:[#allocation9 + $0x154] sm:$0xf]
    %v1101 = vld [vmem:[#allocation9 + $0x158] sm:$0xf]
    %v1102 = vld [vmem:[#allocation9 + $0x15c] sm:$0xf]
    %v1103 = vld [vmem:[#allocation9 + $0x160] sm:$0xf]
    %v1104 = vld [vmem:[#allocation9 + $0x164] sm:$0xf]
    %v1105 = vld [vmem:[#allocation9 + $0x168] sm:$0xf]
    %v1106 = vld [vmem:[#allocation9 + $0x16c] sm:$0xf]
    %v1107 = vld [vmem:[#allocation9 + $0x170] sm:$0xf]
    %v1108 = vld [vmem:[#allocation9 + $0x174] sm:$0xf]
    %v1109 = vld [vmem:[#allocation9 + $0x178] sm:$0xf]
    %v1110 = vld [vmem:[#allocation9 + $0x17c] sm:$0xf]
    %v1111 = vld [vmem:[#allocation9 + $0x180] sm:$0xf]
    %v1112 = vld [vmem:[#allocation9 + $0x184] sm:$0xf]
    %v1113 = vld [vmem:[#allocation9 + $0x188] sm:$0xf]
    %v1114 = vld [vmem:[#allocation9 + $0x18c] sm:$0xf]
    %v1115 = vld [vmem:[#allocation9 + $0x190] sm:$0xf]
    %v1116 = vld [vmem:[#allocation9 + $0x194] sm:$0xf]
    %v1117 = vld [vmem:[#allocation9 + $0x198] sm:$0xf]
    %v1118 = vld [vmem:[#allocation9 + $0x19c] sm:$0xf]
    %v1119 = vld [vmem:[#allocation9 + $0x1a0] sm:$0xf]
    %v1120 = vld [vmem:[#allocation9 + $0x1a4] sm:$0xf]
    %v1121 = vld [vmem:[#allocation9 + $0x1a8] sm:$0xf]
    %v1122 = vld [vmem:[#allocation9 + $0x1ac] sm:$0xf]
    %v1123 = vld [vmem:[#allocation9 + $0x1b0] sm:$0xf]
    %v1124 = vld [vmem:[#allocation9 + $0x1b4] sm:$0xf]
    %v1125 = vld [vmem:[#allocation9 + $0x1b8] sm:$0xf]
    %v1126 = vld [vmem:[#allocation9 + $0x1bc] sm:$0xf]
    %v1127 = vld [vmem:[#allocation9 + $0x1c0] sm:$0xf]
    %v1128 = vld [vmem:[#allocation9 + $0x1c4] sm:$0xf]
    %v1129 = vld [vmem:[#allocation9 + $0x1c8] sm:$0xf]
    %v1130 = vld [vmem:[#allocation9 + $0x1cc] sm:$0xf]
    %v1131 = vld [vmem:[#allocation9 + $0x1d0] sm:$0xf]
    %v1132 = vld [vmem:[#allocation9 + $0x1d4] sm:$0xf]
    %v1133 = vld [vmem:[#allocation9 + $0x1d8] sm:$0xf]
    %v1134 = vld [vmem:[#allocation9 + $0x1dc] sm:$0xf]
    %v1135 = vld [vmem:[#allocation9 + $0x1e0] sm:$0xf]
    %v1136 = vld [vmem:[#allocation9 + $0x1e4] sm:$0xf]
    %v1137 = vld [vmem:[#allocation9 + $0x1e8] sm:$0xf]
    %v1138 = vld [vmem:[#allocation9 + $0x1ec] sm:$0xf]
    %v1139 = vld [vmem:[#allocation9 + $0x1f0] sm:$0xf]
    %v1140 = vld [vmem:[#allocation9 + $0x1f4] sm:$0xf]
    %v1141 = vld [vmem:[#allocation9 + $0x1f8] sm:$0xf]
    %v1142 = vld [vmem:[#allocation9 + $0x1fc] sm:$0xf]
    %v1143 = vld [vmem:[#allocation9 + $0x200] sm:$0xf]
    %v1144 = vld [vmem:[#allocation9 + $0x204] sm:$0xf]
    %v1145 = vld [vmem:[#allocation9 + $0x208] sm:$0xf]
    %v1146 = vld [vmem:[#allocation9 + $0x20c] sm:$0xf]
    %v1147 = vld [vmem:[#allocation9 + $0x210] sm:$0xf]
    %v1148 = vld [vmem:[#allocation9 + $0x214] sm:$0xf]
    %v1149 = vld [vmem:[#allocation9 + $0x218] sm:$0xf]
    %v1150 = vld [vmem:[#allocation9 + $0x21c] sm:$0xf]
    %v1151 = vld [vmem:[#allocation9 + $0x220] sm:$0xf]
    %v1152 = vld [vmem:[#allocation9 + $0x224] sm:$0xf]
    %v1153 = vld [vmem:[#allocation9 + $0x228] sm:$0xf]
    %v1154 = vld [vmem:[#allocation9 + $0x22c] sm:$0xf]
    %v1155 = vld [vmem:[#allocation9 + $0x230] sm:$0xf]
    %v1156 = vld [vmem:[#allocation9 + $0x234] sm:$0xf]
    %v1157 = vld [vmem:[#allocation9 + $0x238] sm:$0xf]
    %v1158 = vld [vmem:[#allocation9 + $0x23c] sm:$0xf]
    %v1159 = vld [vmem:[#allocation9 + $0x240] sm:$0xf]
    %v1160 = vld [vmem:[#allocation9 + $0x244] sm:$0xf]
    %v1161 = vld [vmem:[#allocation9 + $0x248] sm:$0xf]
    %v1162 = vld [vmem:[#allocation9 + $0x24c] sm:$0xf]
    %v1163 = vld [vmem:[#allocation9 + $0x250] sm:$0xf]
    %v1164 = vld [vmem:[#allocation9 + $0x254] sm:$0xf]
    %v1165 = vld [vmem:[#allocation9 + $0x258] sm:$0xf]
    %v1166 = vld [vmem:[#allocation9 + $0x25c] sm:$0xf]
    %v1167 = vld [vmem:[#allocation9 + $0x260] sm:$0xf]
    %v1168 = vld [vmem:[#allocation9 + $0x264] sm:$0xf]
    %v1169 = vld [vmem:[#allocation9 + $0x268] sm:$0xf]
    %v1170 = vld [vmem:[#allocation9 + $0x26c] sm:$0xf]
    %v1171 = vld [vmem:[#allocation9 + $0x270] sm:$0xf]
    %v1172 = vld [vmem:[#allocation9 + $0x274] sm:$0xf]
    %v1173 = vld [vmem:[#allocation9 + $0x278] sm:$0xf]
    %v1174 = vld [vmem:[#allocation9 + $0x27c] sm:$0xf]
    %v1175 = vld [vmem:[#allocation9 + $0x280] sm:$0xf]
    %v1176 = vld [vmem:[#allocation9 + $0x284] sm:$0xf]
    %v1177 = vld [vmem:[#allocation9 + $0x288] sm:$0xf]
    %v1178 = vld [vmem:[#allocation9 + $0x28c] sm:$0xf]
    %v1179 = vld [vmem:[#allocation9 + $0x290] sm:$0xf]
    %v1180 = vld [vmem:[#allocation9 + $0x294] sm:$0xf]
    %v1181 = vld [vmem:[#allocation9 + $0x298] sm:$0xf]
    %v1182 = vld [vmem:[#allocation9 + $0x29c] sm:$0xf]
    %v1183 = vld [vmem:[#allocation9 + $0x2a0] sm:$0xf]
    %v1184 = vld [vmem:[#allocation9 + $0x2a4] sm:$0xf]
    %v1185 = vld [vmem:[#allocation9 + $0x2a8] sm:$0xf]
    %v1186 = vld [vmem:[#allocation9 + $0x2ac] sm:$0xf]
    %v1187 = vld [vmem:[#allocation9 + $0x2b0] sm:$0xf]
    %v1188 = vld [vmem:[#allocation9 + $0x2b4] sm:$0xf]
    %v1189 = vld [vmem:[#allocation9 + $0x2b8] sm:$0xf]
    %v1190 = vld [vmem:[#allocation9 + $0x2bc] sm:$0xf]
    %v1191 = vld [vmem:[#allocation9 + $0x2c0] sm:$0xf]
    %v1192 = vld [vmem:[#allocation9 + $0x2c4] sm:$0xf]
    %v1193 = vld [vmem:[#allocation9 + $0x2c8] sm:$0xf]
    %v1194 = vld [vmem:[#allocation9 + $0x2cc] sm:$0xf]
    %v1195 = vld [vmem:[#allocation9 + $0x2d0] sm:$0xf]
    %v1196 = vld [vmem:[#allocation9 + $0x2d4] sm:$0xf]
    %v1197 = vld [vmem:[#allocation9 + $0x2d8] sm:$0xf]
    %v1198 = vld [vmem:[#allocation9 + $0x2dc] sm:$0xf]
    %v1199 = vld [vmem:[#allocation9 + $0x2e0] sm:$0xf]
    %v1200 = vld [vmem:[#allocation9 + $0x2e4] sm:$0xf]
    %v1201 = vld [vmem:[#allocation9 + $0x2e8] sm:$0xf]
    %v1202 = vld [vmem:[#allocation9 + $0x2ec] sm:$0xf]
    %v1203 = vld [vmem:[#allocation9 + $0x2f0] sm:$0xf]
    %v1204 = vld [vmem:[#allocation9 + $0x2f4] sm:$0xf]
    %v1205 = vld [vmem:[#allocation9 + $0x2f8] sm:$0xf]
    %v1206 = vld [vmem:[#allocation9 + $0x2fc] sm:$0xf]
    %v1207 = vld [vmem:[#allocation9 + $0x300] sm:$0xf]
    %v1208 = vld [vmem:[#allocation9 + $0x304] sm:$0xf]
    %v1209 = vld [vmem:[#allocation9 + $0x308] sm:$0xf]
    %v1210 = vld [vmem:[#allocation9 + $0x30c] sm:$0xf]
    %v1211 = vld [vmem:[#allocation9 + $0x310] sm:$0xf]
    %v1212 = vld [vmem:[#allocation9 + $0x314] sm:$0xf]
    %v1213 = vld [vmem:[#allocation9 + $0x318] sm:$0xf]
    %v1214 = vld [vmem:[#allocation9 + $0x31c] sm:$0xf]
    %v1215 = vld [vmem:[#allocation9 + $0x320] sm:$0xf]
    %v1216 = vld [vmem:[#allocation9 + $0x324] sm:$0xf]
    %v1217 = vld [vmem:[#allocation9 + $0x328] sm:$0xf]
    %v1218 = vld [vmem:[#allocation9 + $0x32c] sm:$0xf]
    %v1219 = vld [vmem:[#allocation9 + $0x330] sm:$0xf]
    %v1220 = vld [vmem:[#allocation9 + $0x334] sm:$0xf]
    %v1221 = vld [vmem:[#allocation9 + $0x338] sm:$0xf]
    %v1222 = vld [vmem:[#allocation9 + $0x33c] sm:$0xf]
    %v1223 = vld [vmem:[#allocation9 + $0x340] sm:$0xf]
    %v1224 = vld [vmem:[#allocation9 + $0x344] sm:$0xf]
    %v1225 = vld [vmem:[#allocation9 + $0x348] sm:$0xf]
    %v1226 = vld [vmem:[#allocation9 + $0x34c] sm:$0xf]
    %v1227 = vld [vmem:[#allocation9 + $0x350] sm:$0xf]
    %v1228 = vld [vmem:[#allocation9 + $0x354] sm:$0xf]
    %v1229 = vld [vmem:[#allocation9 + $0x358] sm:$0xf]
    %v1230 = vld [vmem:[#allocation9 + $0x35c] sm:$0xf]
    %v1231 = vld [vmem:[#allocation9 + $0x360] sm:$0xf]
    %v1232 = vld [vmem:[#allocation9 + $0x364] sm:$0xf]
    %v1233 = vld [vmem:[#allocation9 + $0x368] sm:$0xf]
    %v1234 = vld [vmem:[#allocation9 + $0x36c] sm:$0xf]
    %v1235 = vld [vmem:[#allocation9 + $0x370] sm:$0xf]
    %v1236 = vld [vmem:[#allocation9 + $0x374] sm:$0xf]
    %v1237 = vld [vmem:[#allocation9 + $0x378] sm:$0xf]
    %v1238 = vld [vmem:[#allocation9 + $0x37c] sm:$0xf]
    %v1239 = vld [vmem:[#allocation9 + $0x380] sm:$0xf]
    %v1240 = vld [vmem:[#allocation9 + $0x384] sm:$0xf]
    %v1241 = vld [vmem:[#allocation9 + $0x388] sm:$0xf]
    %v1242 = vld [vmem:[#allocation9 + $0x38c] sm:$0xf]
    %v1243 = vld [vmem:[#allocation9 + $0x390] sm:$0xf]
    %v1244 = vld [vmem:[#allocation9 + $0x394] sm:$0xf]
    %v1245 = vld [vmem:[#allocation9 + $0x398] sm:$0xf]
    %v1246 = vld [vmem:[#allocation9 + $0x39c] sm:$0xf]
    %v1247 = vld [vmem:[#allocation9 + $0x3a0] sm:$0xf]
    %v1248 = vld [vmem:[#allocation9 + $0x3a4] sm:$0xf]
    %v1249 = vld [vmem:[#allocation9 + $0x3a8] sm:$0xf]
    %v1250 = vld [vmem:[#allocation9 + $0x3ac] sm:$0xf]
    %v1251 = vld [vmem:[#allocation9 + $0x3b0] sm:$0xf]
    %v1252 = vld [vmem:[#allocation9 + $0x3b4] sm:$0xf]
    %v1253 = vld [vmem:[#allocation9 + $0x3b8] sm:$0xf]
    %v1254 = vld [vmem:[#allocation9 + $0x3bc] sm:$0xf]
    %v1255 = vld [vmem:[#allocation9 + $0x3c0] sm:$0xf]
    %v1256 = vld [vmem:[#allocation9 + $0x3c4] sm:$0xf]
    %v1257 = vld [vmem:[#allocation9 + $0x3c8] sm:$0xf]
    %v1258 = vld [vmem:[#allocation9 + $0x3cc] sm:$0xf]
    %v1259 = vld [vmem:[#allocation9 + $0x3d0] sm:$0xf]
    %v1260 = vld [vmem:[#allocation9 + $0x3d4] sm:$0xf]
    %v1261 = vld [vmem:[#allocation9 + $0x3d8] sm:$0xf]
    %v1262 = vld [vmem:[#allocation9 + $0x3dc] sm:$0xf]
    %v1263 = vld [vmem:[#allocation9 + $0x3e0] sm:$0xf]
    %v1264 = vld [vmem:[#allocation9 + $0x3e4] sm:$0xf]
    %v1265 = vld [vmem:[#allocation9 + $0x3e8] sm:$0xf]
    %v1266 = vld [vmem:[#allocation9 + $0x3ec] sm:$0xf]
    %v1267 = vld [vmem:[#allocation9 + $0x3f0] sm:$0xf]
    %v1268 = vld [vmem:[#allocation9 + $0x3f4] sm:$0xf]
    %v1269 = vld [vmem:[#allocation9 + $0x3f8] sm:$0xf]
    %v1270 = vld [vmem:[#allocation9 + $0x3fc] sm:$0xf]
    %v1272 = vunpack.c.l.b16 %v1007
    %v1273 = vunpack.c.h.b16 %v1007
    %v1274 = vpack.c.b16 %v1272, %v1272
    %v1275 = vpack.c.b16 %v1273, %v1273
    %v1310 = vunpack.c.l.b16 %v1015
    %v1311 = vunpack.c.l.b16 %v1016
    %v1312 = vunpack.c.l.b16 %v1017
    %v1313 = vunpack.c.l.b16 %v1018
    %v1314 = vunpack.c.l.b16 %v1019
    %v1315 = vunpack.c.l.b16 %v1020
    %v1316 = vunpack.c.l.b16 %v1021
    %v1317 = vunpack.c.l.b16 %v1022
    %v1318 = vunpack.c.l.b16 %v1023
    %v1319 = vunpack.c.l.b16 %v1024
    %v1320 = vunpack.c.l.b16 %v1025
    %v1321 = vunpack.c.l.b16 %v1026
    %v1322 = vunpack.c.l.b16 %v1027
    %v1323 = vunpack.c.l.b16 %v1028
    %v1324 = vunpack.c.l.b16 %v1029
    %v1325 = vunpack.c.l.b16 %v1030
    %v1326 = vunpack.c.l.b16 %v1031
    %v1327 = vunpack.c.l.b16 %v1032
    %v1328 = vunpack.c.l.b16 %v1033
    %v1329 = vunpack.c.l.b16 %v1034
    %v1330 = vunpack.c.l.b16 %v1035
    %v1331 = vunpack.c.l.b16 %v1036
    %v1332 = vunpack.c.l.b16 %v1037
    %v1333 = vunpack.c.l.b16 %v1038
    %v1334 = vunpack.c.l.b16 %v1039
    %v1335 = vunpack.c.l.b16 %v1040
    %v1336 = vunpack.c.l.b16 %v1041
    %v1337 = vunpack.c.l.b16 %v1042
    %v1338 = vunpack.c.l.b16 %v1043
    %v1339 = vunpack.c.l.b16 %v1044
    %v1340 = vunpack.c.l.b16 %v1045
    %v1341 = vunpack.c.l.b16 %v1046
    %v1342 = vpack.c.b16 %v1311, %v1310
    %v1343 = vpack.c.b16 %v1313, %v1312
    %v1344 = vpack.c.b16 %v1315, %v1314
    %v1345 = vpack.c.b16 %v1317, %v1316
    %v1346 = vpack.c.b16 %v1319, %v1318
    %v1347 = vpack.c.b16 %v1321, %v1320
    %v1348 = vpack.c.b16 %v1323, %v1322
    %v1349 = vpack.c.b16 %v1325, %v1324
    %v1350 = vpack.c.b16 %v1327, %v1326
    %v1351 = vpack.c.b16 %v1329, %v1328
    %v1352 = vpack.c.b16 %v1331, %v1330
    %v1353 = vpack.c.b16 %v1333, %v1332
    %v1354 = vpack.c.b16 %v1335, %v1334
    %v1355 = vpack.c.b16 %v1337, %v1336
    %v1356 = vpack.c.b16 %v1339, %v1338
    %v1357 = vpack.c.b16 %v1341, %v1340
    %1374 = vmatpush.bf16.msra.mxu0 %v1349
    %1375 = vmatpush.bf16.msra.mxu0 %v1348
    %1376 = vmatpush.bf16.msra.mxu0 %v1347
    %1377 = vmatpush.bf16.msra.mxu0 %v1346
    %1378 = vmatpush.bf16.msra.mxu0 %v1345
    %1379 = vmatpush.bf16.msra.mxu0 %v1344
    %1380 = vmatpush.bf16.msra.mxu0 %v1343
    %1381 = vmatpush.bf16.msra.mxu0 %v1342
    %1382 = vmatmul.bf16.gmra.mxu0 %v1274
    %v1383 = vpop.f32.mrf.mxu0
    %v1384 = vadd.f32 0.0, %v1383
    %v1385 = vpop.f32.mrf.mxu0
    %1386 = vdwg.mxu0
    %1387 = vmatpush.bf16.msra.mxu0 %v1357
    %1388 = vmatpush.bf16.msra.mxu0 %v1356
    %1389 = vmatpush.bf16.msra.mxu0 %v1355
    %1390 = vmatpush.bf16.msra.mxu0 %v1354
    %1391 = vmatpush.bf16.msra.mxu0 %v1353
    %1392 = vmatpush.bf16.msra.mxu0 %v1352
    %1393 = vmatpush.bf16.msra.mxu0 %v1351
    %1394 = vmatpush.bf16.msra.mxu0 %v1350
    %1395 = vmatmul.bf16.gmra.mxu0 %v1275
    %v1396 = vpop.f32.mrf.mxu0
    %v1397 = vadd.f32 %v1384, %v1396
    %v1398 = vpop.f32.mrf.mxu0
    %1399 = vdwg.mxu0
    %v1401 = vunpack.c.l.b16 %v1008
    %v1402 = vunpack.c.h.b16 %v1008
    %v1403 = vpack.c.b16 %v1401, %v1401
    %v1404 = vpack.c.b16 %v1402, %v1402
    %v1439 = vunpack.c.l.b16 %v1047
    %v1440 = vunpack.c.l.b16 %v1048
    %v1441 = vunpack.c.l.b16 %v1049
    %v1442 = vunpack.c.l.b16 %v1050
    %v1443 = vunpack.c.l.b16 %v1051
    %v1444 = vunpack.c.l.b16 %v1052
    %v1445 = vunpack.c.l.b16 %v1053
    %v1446 = vunpack.c.l.b16 %v1054
    %v1447 = vunpack.c.l.b16 %v1055
    %v1448 = vunpack.c.l.b16 %v1056
    %v1449 = vunpack.c.l.b16 %v1057
    %v1450 = vunpack.c.l.b16 %v1058
    %v1451 = vunpack.c.l.b16 %v1059
    %v1452 = vunpack.c.l.b16 %v1060
    %v1453 = vunpack.c.l.b16 %v1061
    %v1454 = vunpack.c.l.b16 %v1062
    %v1455 = vunpack.c.l.b16 %v1063
    %v1456 = vunpack.c.l.b16 %v1064
    %v1457 = vunpack.c.l.b16 %v1065
    %v1458 = vunpack.c.l.b16 %v1066
    %v1459 = vunpack.c.l.b16 %v1067
    %v1460 = vunpack.c.l.b16 %v1068
    %v1461 = vunpack.c.l.b16 %v1069
    %v1462 = vunpack.c.l.b16 %v1070
    %v1463 = vunpack.c.l.b16 %v1071
    %v1464 = vunpack.c.l.b16 %v1072
    %v1465 = vunpack.c.l.b16 %v1073
    %v1466 = vunpack.c.l.b16 %v1074
    %v1467 = vunpack.c.l.b16 %v1075
    %v1468 = vunpack.c.l.b16 %v1076
    %v1469 = vunpack.c.l.b16 %v1077
    %v1470 = vunpack.c.l.b16 %v1078
    %v1471 = vpack.c.b16 %v1440, %v1439
    %v1472 = vpack.c.b16 %v1442, %v1441
    %v1473 = vpack.c.b16 %v1444, %v1443
    %v1474 = vpack.c.b16 %v1446, %v1445
    %v1475 = vpack.c.b16 %v1448, %v1447
    %v1476 = vpack.c.b16 %v1450, %v1449
    %v1477 = vpack.c.b16 %v1452, %v1451
    %v1478 = vpack.c.b16 %v1454, %v1453
    %v1479 = vpack.c.b16 %v1456, %v1455
    %v1480 = vpack.c.b16 %v1458, %v1457
    %v1481 = vpack.c.b16 %v1460, %v1459
    %v1482 = vpack.c.b16 %v1462, %v1461
    %v1483 = vpack.c.b16 %v1464, %v1463
    %v1484 = vpack.c.b16 %v1466, %v1465
    %v1485 = vpack.c.b16 %v1468, %v1467
    %v1486 = vpack.c.b16 %v1470, %v1469
    %1503 = vmatpush.bf16.msra.mxu0 %v1478
    %1504 = vmatpush.bf16.msra.mxu0 %v1477
    %1505 = vmatpush.bf16.msra.mxu0 %v1476
    %1506 = vmatpush.bf16.msra.mxu0 %v1475
    %1507 = vmatpush.bf16.msra.mxu0 %v1474
    %1508 = vmatpush.bf16.msra.mxu0 %v1473
    %1509 = vmatpush.bf16.msra.mxu0 %v1472
    %1510 = vmatpush.bf16.msra.mxu0 %v1471
    %1511 = vmatmul.bf16.gmra.mxu0 %v1403
    %v1512 = vpop.f32.mrf.mxu0
    %v1513 = vadd.f32 0.0, %v1512
    %v1514 = vpop.f32.mrf.mxu0
    %1515 = vdwg.mxu0
    %1516 = vmatpush.bf16.msra.mxu0 %v1486
    %1517 = vmatpush.bf16.msra.mxu0 %v1485
    %1518 = vmatpush.bf16.msra.mxu0 %v1484
    %1519 = vmatpush.bf16.msra.mxu0 %v1483
    %1520 = vmatpush.bf16.msra.mxu0 %v1482
    %1521 = vmatpush.bf16.msra.mxu0 %v1481
    %1522 = vmatpush.bf16.msra.mxu0 %v1480
    %1523 = vmatpush.bf16.msra.mxu0 %v1479
    %1524 = vmatmul.bf16.gmra.mxu0 %v1404
    %v1525 = vpop.f32.mrf.mxu0
    %v1526 = vadd.f32 %v1513, %v1525
    %v1527 = vpop.f32.mrf.mxu0
    %1528 = vdwg.mxu0
    %v1530 = vunpack.c.l.b16 %v1009
    %v1531 = vunpack.c.h.b16 %v1009
    %v1532 = vpack.c.b16 %v1530, %v1530
    %v1533 = vpack.c.b16 %v1531, %v1531
    %v1568 = vunpack.c.l.b16 %v1079
    %v1569 = vunpack.c.l.b16 %v1080
    %v1570 = vunpack.c.l.b16 %v1081
    %v1571 = vunpack.c.l.b16 %v1082
    %v1572 = vunpack.c.l.b16 %v1083
    %v1573 = vunpack.c.l.b16 %v1084
    %v1574 = vunpack.c.l.b16 %v1085
    %v1575 = vunpack.c.l.b16 %v1086
    %v1576 = vunpack.c.l.b16 %v1087
    %v1577 = vunpack.c.l.b16 %v1088
    %v1578 = vunpack.c.l.b16 %v1089
    %v1579 = vunpack.c.l.b16 %v1090
    %v1580 = vunpack.c.l.b16 %v1091
    %v1581 = vunpack.c.l.b16 %v1092
    %v1582 = vunpack.c.l.b16 %v1093
    %v1583 = vunpack.c.l.b16 %v1094
    %v1584 = vunpack.c.l.b16 %v1095
    %v1585 = vunpack.c.l.b16 %v1096
    %v1586 = vunpack.c.l.b16 %v1097
    %v1587 = vunpack.c.l.b16 %v1098
    %v1588 = vunpack.c.l.b16 %v1099
    %v1589 = vunpack.c.l.b16 %v1100
    %v1590 = vunpack.c.l.b16 %v1101
    %v1591 = vunpack.c.l.b16 %v1102
    %v1592 = vunpack.c.l.b16 %v1103
    %v1593 = vunpack.c.l.b16 %v1104
    %v1594 = vunpack.c.l.b16 %v1105
    %v1595 = vunpack.c.l.b16 %v1106
    %v1596 = vunpack.c.l.b16 %v1107
    %v1597 = vunpack.c.l.b16 %v1108
    %v1598 = vunpack.c.l.b16 %v1109
    %v1599 = vunpack.c.l.b16 %v1110
    %v1600 = vpack.c.b16 %v1569, %v1568
    %v1601 = vpack.c.b16 %v1571, %v1570
    %v1602 = vpack.c.b16 %v1573, %v1572
    %v1603 = vpack.c.b16 %v1575, %v1574
    %v1604 = vpack.c.b16 %v1577, %v1576
    %v1605 = vpack.c.b16 %v1579, %v1578
    %v1606 = vpack.c.b16 %v1581, %v1580
    %v1607 = vpack.c.b16 %v1583, %v1582
    %v1608 = vpack.c.b16 %v1585, %v1584
    %v1609 = vpack.c.b16 %v1587, %v1586
    %v1610 = vpack.c.b16 %v1589, %v1588
    %v1611 = vpack.c.b16 %v1591, %v1590
    %v1612 = vpack.c.b16 %v1593, %v1592
    %v1613 = vpack.c.b16 %v1595, %v1594
    %v1614 = vpack.c.b16 %v1597, %v1596
    %v1615 = vpack.c.b16 %v1599, %v1598
    %1632 = vmatpush.bf16.msra.mxu0 %v1607
    %1633 = vmatpush.bf16.msra.mxu0 %v1606
    %1634 = vmatpush.bf16.msra.mxu0 %v1605
    %1635 = vmatpush.bf16.msra.mxu0 %v1604
    %1636 = vmatpush.bf16.msra.mxu0 %v1603
    %1637 = vmatpush.bf16.msra.mxu0 %v1602
    %1638 = vmatpush.bf16.msra.mxu0 %v1601
    %1639 = vmatpush.bf16.msra.mxu0 %v1600
    %1640 = vmatmul.bf16.gmra.mxu0 %v1532
    %v1641 = vpop.f32.mrf.mxu0
    %v1642 = vadd.f32 0.0, %v1641
    %v1643 = vpop.f32.mrf.mxu0
    %1644 = vdwg.mxu0
    %1645 = vmatpush.bf16.msra.mxu0 %v1615
    %1646 = vmatpush.bf16.msra.mxu0 %v1614
    %1647 = vmatpush.bf16.msra.mxu0 %v1613
    %1648 = vmatpush.bf16.msra.mxu0 %v1612
    %1649 = vmatpush.bf16.msra.mxu0 %v1611
    %1650 = vmatpush.bf16.msra.mxu0 %v1610
    %1651 = vmatpush.bf16.msra.mxu0 %v1609
    %1652 = vmatpush.bf16.msra.mxu0 %v1608
    %1653 = vmatmul.bf16.gmra.mxu0 %v1533
    %v1654 = vpop.f32.mrf.mxu0
    %v1655 = vadd.f32 %v1642, %v1654
    %v1656 = vpop.f32.mrf.mxu0
    %1657 = vdwg.mxu0
    %v1659 = vunpack.c.l.b16 %v1010
    %v1660 = vunpack.c.h.b16 %v1010
    %v1661 = vpack.c.b16 %v1659, %v1659
    %v1662 = vpack.c.b16 %v1660, %v1660
    %v1697 = vunpack.c.l.b16 %v1111
    %v1698 = vunpack.c.l.b16 %v1112
    %v1699 = vunpack.c.l.b16 %v1113
    %v1700 = vunpack.c.l.b16 %v1114
    %v1701 = vunpack.c.l.b16 %v1115
    %v1702 = vunpack.c.l.b16 %v1116
    %v1703 = vunpack.c.l.b16 %v1117
    %v1704 = vunpack.c.l.b16 %v1118
    %v1705 = vunpack.c.l.b16 %v1119
    %v1706 = vunpack.c.l.b16 %v1120
    %v1707 = vunpack.c.l.b16 %v1121
    %v1708 = vunpack.c.l.b16 %v1122
    %v1709 = vunpack.c.l.b16 %v1123
    %v1710 = vunpack.c.l.b16 %v1124
    %v1711 = vunpack.c.l.b16 %v1125
    %v1712 = vunpack.c.l.b16 %v1126
    %v1713 = vunpack.c.l.b16 %v1127
    %v1714 = vunpack.c.l.b16 %v1128
    %v1715 = vunpack.c.l.b16 %v1129
    %v1716 = vunpack.c.l.b16 %v1130
    %v1717 = vunpack.c.l.b16 %v1131
    %v1718 = vunpack.c.l.b16 %v1132
    %v1719 = vunpack.c.l.b16 %v1133
    %v1720 = vunpack.c.l.b16 %v1134
    %v1721 = vunpack.c.l.b16 %v1135
    %v1722 = vunpack.c.l.b16 %v1136
    %v1723 = vunpack.c.l.b16 %v1137
    %v1724 = vunpack.c.l.b16 %v1138
    %v1725 = vunpack.c.l.b16 %v1139
    %v1726 = vunpack.c.l.b16 %v1140
    %v1727 = vunpack.c.l.b16 %v1141
    %v1728 = vunpack.c.l.b16 %v1142
    %v1729 = vpack.c.b16 %v1698, %v1697
    %v1730 = vpack.c.b16 %v1700, %v1699
    %v1731 = vpack.c.b16 %v1702, %v1701
    %v1732 = vpack.c.b16 %v1704, %v1703
    %v1733 = vpack.c.b16 %v1706, %v1705
    %v1734 = vpack.c.b16 %v1708, %v1707
    %v1735 = vpack.c.b16 %v1710, %v1709
    %v1736 = vpack.c.b16 %v1712, %v1711
    %v1737 = vpack.c.b16 %v1714, %v1713
    %v1738 = vpack.c.b16 %v1716, %v1715
    %v1739 = vpack.c.b16 %v1718, %v1717
    %v1740 = vpack.c.b16 %v1720, %v1719
    %v1741 = vpack.c.b16 %v1722, %v1721
    %v1742 = vpack.c.b16 %v1724, %v1723
    %v1743 = vpack.c.b16 %v1726, %v1725
    %v1744 = vpack.c.b16 %v1728, %v1727
    %1761 = vmatpush.bf16.msra.mxu0 %v1736
    %1762 = vmatpush.bf16.msra.mxu0 %v1735
    %1763 = vmatpush.bf16.msra.mxu0 %v1734
    %1764 = vmatpush.bf16.msra.mxu0 %v1733
    %1765 = vmatpush.bf16.msra.mxu0 %v1732
    %1766 = vmatpush.bf16.msra.mxu0 %v1731
    %1767 = vmatpush.bf16.msra.mxu0 %v1730
    %1768 = vmatpush.bf16.msra.mxu0 %v1729
    %1769 = vmatmul.bf16.gmra.mxu0 %v1661
    %v1770 = vpop.f32.mrf.mxu0
    %v1771 = vadd.f32 0.0, %v1770
    %v1772 = vpop.f32.mrf.mxu0
    %1773 = vdwg.mxu0
    %1774 = vmatpush.bf16.msra.mxu0 %v1744
    %1775 = vmatpush.bf16.msra.mxu0 %v1743
    %1776 = vmatpush.bf16.msra.mxu0 %v1742
    %1777 = vmatpush.bf16.msra.mxu0 %v1741
    %1778 = vmatpush.bf16.msra.mxu0 %v1740
    %1779 = vmatpush.bf16.msra.mxu0 %v1739
    %1780 = vmatpush.bf16.msra.mxu0 %v1738
    %1781 = vmatpush.bf16.msra.mxu0 %v1737
    %1782 = vmatmul.bf16.gmra.mxu0 %v1662
    %v1783 = vpop.f32.mrf.mxu0
    %v1784 = vadd.f32 %v1771, %v1783
    %v1785 = vpop.f32.mrf.mxu0
    %1786 = vdwg.mxu0
    %v1788 = vunpack.c.l.b16 %v1011
    %v1789 = vunpack.c.h.b16 %v1011
    %v1790 = vpack.c.b16 %v1788, %v1788
    %v1791 = vpack.c.b16 %v1789, %v1789
    %v1826 = vunpack.c.l.b16 %v1143
    %v1827 = vunpack.c.l.b16 %v1144
    %v1828 = vunpack.c.l.b16 %v1145
    %v1829 = vunpack.c.l.b16 %v1146
    %v1830 = vunpack.c.l.b16 %v1147
    %v1831 = vunpack.c.l.b16 %v1148
    %v1832 = vunpack.c.l.b16 %v1149
    %v1833 = vunpack.c.l.b16 %v1150
    %v1834 = vunpack.c.l.b16 %v1151
    %v1835 = vunpack.c.l.b16 %v1152
    %v1836 = vunpack.c.l.b16 %v1153
    %v1837 = vunpack.c.l.b16 %v1154
    %v1838 = vunpack.c.l.b16 %v1155
    %v1839 = vunpack.c.l.b16 %v1156
    %v1840 = vunpack.c.l.b16 %v1157
    %v1841 = vunpack.c.l.b16 %v1158
    %v1842 = vunpack.c.l.b16 %v1159
    %v1843 = vunpack.c.l.b16 %v1160
    %v1844 = vunpack.c.l.b16 %v1161
    %v1845 = vunpack.c.l.b16 %v1162
    %v1846 = vunpack.c.l.b16 %v1163
    %v1847 = vunpack.c.l.b16 %v1164
    %v1848 = vunpack.c.l.b16 %v1165
    %v1849 = vunpack.c.l.b16 %v1166
    %v1850 = vunpack.c.l.b16 %v1167
    %v1851 = vunpack.c.l.b16 %v1168
    %v1852 = vunpack.c.l.b16 %v1169
    %v1853 = vunpack.c.l.b16 %v1170
    %v1854 = vunpack.c.l.b16 %v1171
    %v1855 = vunpack.c.l.b16 %v1172
    %v1856 = vunpack.c.l.b16 %v1173
    %v1857 = vunpack.c.l.b16 %v1174
    %v1858 = vpack.c.b16 %v1827, %v1826
    %v1859 = vpack.c.b16 %v1829, %v1828
    %v1860 = vpack.c.b16 %v1831, %v1830
    %v1861 = vpack.c.b16 %v1833, %v1832
    %v1862 = vpack.c.b16 %v1835, %v1834
    %v1863 = vpack.c.b16 %v1837, %v1836
    %v1864 = vpack.c.b16 %v1839, %v1838
    %v1865 = vpack.c.b16 %v1841, %v1840
    %v1866 = vpack.c.b16 %v1843, %v1842
    %v1867 = vpack.c.b16 %v1845, %v1844
    %v1868 = vpack.c.b16 %v1847, %v1846
    %v1869 = vpack.c.b16 %v1849, %v1848
    %v1870 = vpack.c.b16 %v1851, %v1850
    %v1871 = vpack.c.b16 %v1853, %v1852
    %v1872 = vpack.c.b16 %v1855, %v1854
    %v1873 = vpack.c.b16 %v1857, %v1856
    %1890 = vmatpush.bf16.msra.mxu0 %v1865
    %1891 = vmatpush.bf16.msra.mxu0 %v1864
    %1892 = vmatpush.bf16.msra.mxu0 %v1863
    %1893 = vmatpush.bf16.msra.mxu0 %v1862
    %1894 = vmatpush.bf16.msra.mxu0 %v1861
    %1895 = vmatpush.bf16.msra.mxu0 %v1860
    %1896 = vmatpush.bf16.msra.mxu0 %v1859
    %1897 = vmatpush.bf16.msra.mxu0 %v1858
    %1898 = vmatmul.bf16.gmra.mxu0 %v1790
    %v1899 = vpop.f32.mrf.mxu0
    %v1900 = vadd.f32 0.0, %v1899
    %v1901 = vpop.f32.mrf.mxu0
    %1902 = vdwg.mxu0
    %1903 = vmatpush.bf16.msra.mxu0 %v1873
    %1904 = vmatpush.bf16.msra.mxu0 %v1872
    %1905 = vmatpush.bf16.msra.mxu0 %v1871
    %1906 = vmatpush.bf16.msra.mxu0 %v1870
    %1907 = vmatpush.bf16.msra.mxu0 %v1869
    %1908 = vmatpush.bf16.msra.mxu0 %v1868
    %1909 = vmatpush.bf16.msra.mxu0 %v1867
    %1910 = vmatpush.bf16.msra.mxu0 %v1866
    %1911 = vmatmul.bf16.gmra.mxu0 %v1791
    %v1912 = vpop.f32.mrf.mxu0
    %v1913 = vadd.f32 %v1900, %v1912
    %v1914 = vpop.f32.mrf.mxu0
    %1915 = vdwg.mxu0
    %v1917 = vunpack.c.l.b16 %v1012
    %v1918 = vunpack.c.h.b16 %v1012
    %v1919 = vpack.c.b16 %v1917, %v1917
    %v1920 = vpack.c.b16 %v1918, %v1918
    %v1955 = vunpack.c.l.b16 %v1175
    %v1956 = vunpack.c.l.b16 %v1176
    %v1957 = vunpack.c.l.b16 %v1177
    %v1958 = vunpack.c.l.b16 %v1178
    %v1959 = vunpack.c.l.b16 %v1179
    %v1960 = vunpack.c.l.b16 %v1180
    %v1961 = vunpack.c.l.b16 %v1181
    %v1962 = vunpack.c.l.b16 %v1182
    %v1963 = vunpack.c.l.b16 %v1183
    %v1964 = vunpack.c.l.b16 %v1184
    %v1965 = vunpack.c.l.b16 %v1185
    %v1966 = vunpack.c.l.b16 %v1186
    %v1967 = vunpack.c.l.b16 %v1187
    %v1968 = vunpack.c.l.b16 %v1188
    %v1969 = vunpack.c.l.b16 %v1189
    %v1970 = vunpack.c.l.b16 %v1190
    %v1971 = vunpack.c.l.b16 %v1191
    %v1972 = vunpack.c.l.b16 %v1192
    %v1973 = vunpack.c.l.b16 %v1193
    %v1974 = vunpack.c.l.b16 %v1194
    %v1975 = vunpack.c.l.b16 %v1195
    %v1976 = vunpack.c.l.b16 %v1196
    %v1977 = vunpack.c.l.b16 %v1197
    %v1978 = vunpack.c.l.b16 %v1198
    %v1979 = vunpack.c.l.b16 %v1199
    %v1980 = vunpack.c.l.b16 %v1200
    %v1981 = vunpack.c.l.b16 %v1201
    %v1982 = vunpack.c.l.b16 %v1202
    %v1983 = vunpack.c.l.b16 %v1203
    %v1984 = vunpack.c.l.b16 %v1204
    %v1985 = vunpack.c.l.b16 %v1205
    %v1986 = vunpack.c.l.b16 %v1206
    %v1987 = vpack.c.b16 %v1956, %v1955
    %v1988 = vpack.c.b16 %v1958, %v1957
    %v1989 = vpack.c.b16 %v1960, %v1959
    %v1990 = vpack.c.b16 %v1962, %v1961
    %v1991 = vpack.c.b16 %v1964, %v1963
    %v1992 = vpack.c.b16 %v1966, %v1965
    %v1993 = vpack.c.b16 %v1968, %v1967
    %v1994 = vpack.c.b16 %v1970, %v1969
    %v1995 = vpack.c.b16 %v1972, %v1971
    %v1996 = vpack.c.b16 %v1974, %v1973
    %v1997 = vpack.c.b16 %v1976, %v1975
    %v1998 = vpack.c.b16 %v1978, %v1977
    %v1999 = vpack.c.b16 %v1980, %v1979
    %v2000 = vpack.c.b16 %v1982, %v1981
    %v2001 = vpack.c.b16 %v1984, %v1983
    %v2002 = vpack.c.b16 %v1986, %v1985
    %2019 = vmatpush.bf16.msra.mxu0 %v1994
    %2020 = vmatpush.bf16.msra.mxu0 %v1993
    %2021 = vmatpush.bf16.msra.mxu0 %v1992
    %2022 = vmatpush.bf16.msra.mxu0 %v1991
    %2023 = vmatpush.bf16.msra.mxu0 %v1990
    %2024 = vmatpush.bf16.msra.mxu0 %v1989
    %2025 = vmatpush.bf16.msra.mxu0 %v1988
    %2026 = vmatpush.bf16.msra.mxu0 %v1987
    %2027 = vmatmul.bf16.gmra.mxu0 %v1919
    %v2028 = vpop.f32.mrf.mxu0
    %v2029 = vadd.f32 0.0, %v2028
    %v2030 = vpop.f32.mrf.mxu0
    %2031 = vdwg.mxu0
    %2032 = vmatpush.bf16.msra.mxu0 %v2002
    %2033 = vmatpush.bf16.msra.mxu0 %v2001
    %2034 = vmatpush.bf16.msra.mxu0 %v2000
    %2035 = vmatpush.bf16.msra.mxu0 %v1999
    %2036 = vmatpush.bf16.msra.mxu0 %v1998
    %2037 = vmatpush.bf16.msra.mxu0 %v1997
    %2038 = vmatpush.bf16.msra.mxu0 %v1996
    %2039 = vmatpush.bf16.msra.mxu0 %v1995
    %2040 = vmatmul.bf16.gmra.mxu0 %v1920
    %v2041 = vpop.f32.mrf.mxu0
    %v2042 = vadd.f32 %v2029, %v2041
    %v2043 = vpop.f32.mrf.mxu0
    %2044 = vdwg.mxu0
    %v2046 = vunpack.c.l.b16 %v1013
    %v2047 = vunpack.c.h.b16 %v1013
    %v2048 = vpack.c.b16 %v2046, %v2046
    %v2049 = vpack.c.b16 %v2047, %v2047
    %v2084 = vunpack.c.l.b16 %v1207
    %v2085 = vunpack.c.l.b16 %v1208
    %v2086 = vunpack.c.l.b16 %v1209
    %v2087 = vunpack.c.l.b16 %v1210
    %v2088 = vunpack.c.l.b16 %v1211
    %v2089 = vunpack.c.l.b16 %v1212
    %v2090 = vunpack.c.l.b16 %v1213
    %v2091 = vunpack.c.l.b16 %v1214
    %v2092 = vunpack.c.l.b16 %v1215
    %v2093 = vunpack.c.l.b16 %v1216
    %v2094 = vunpack.c.l.b16 %v1217
    %v2095 = vunpack.c.l.b16 %v1218
    %v2096 = vunpack.c.l.b16 %v1219
    %v2097 = vunpack.c.l.b16 %v1220
    %v2098 = vunpack.c.l.b16 %v1221
    %v2099 = vunpack.c.l.b16 %v1222
    %v2100 = vunpack.c.l.b16 %v1223
    %v2101 = vunpack.c.l.b16 %v1224
    %v2102 = vunpack.c.l.b16 %v1225
    %v2103 = vunpack.c.l.b16 %v1226
    %v2104 = vunpack.c.l.b16 %v1227
    %v2105 = vunpack.c.l.b16 %v1228
    %v2106 = vunpack.c.l.b16 %v1229
    %v2107 = vunpack.c.l.b16 %v1230
    %v2108 = vunpack.c.l.b16 %v1231
    %v2109 = vunpack.c.l.b16 %v1232
    %v2110 = vunpack.c.l.b16 %v1233
    %v2111 = vunpack.c.l.b16 %v1234
    %v2112 = vunpack.c.l.b16 %v1235
    %v2113 = vunpack.c.l.b16 %v1236
    %v2114 = vunpack.c.l.b16 %v1237
    %v2115 = vunpack.c.l.b16 %v1238
    %v2116 = vpack.c.b16 %v2085, %v2084
    %v2117 = vpack.c.b16 %v2087, %v2086
    %v2118 = vpack.c.b16 %v2089, %v2088
    %v2119 = vpack.c.b16 %v2091, %v2090
    %v2120 = vpack.c.b16 %v2093, %v2092
    %v2121 = vpack.c.b16 %v2095, %v2094
    %v2122 = vpack.c.b16 %v2097, %v2096
    %v2123 = vpack.c.b16 %v2099, %v2098
    %v2124 = vpack.c.b16 %v2101, %v2100
    %v2125 = vpack.c.b16 %v2103, %v2102
    %v2126 = vpack.c.b16 %v2105, %v2104
    %v2127 = vpack.c.b16 %v2107, %v2106
    %v2128 = vpack.c.b16 %v2109, %v2108
    %v2129 = vpack.c.b16 %v2111, %v2110
    %v2130 = vpack.c.b16 %v2113, %v2112
    %v2131 = vpack.c.b16 %v2115, %v2114
    %2148 = vmatpush.bf16.msra.mxu0 %v2123
    %2149 = vmatpush.bf16.msra.mxu0 %v2122
    %2150 = vmatpush.bf16.msra.mxu0 %v2121
    %2151 = vmatpush.bf16.msra.mxu0 %v2120
    %2152 = vmatpush.bf16.msra.mxu0 %v2119
    %2153 = vmatpush.bf16.msra.mxu0 %v2118
    %2154 = vmatpush.bf16.msra.mxu0 %v2117
    %2155 = vmatpush.bf16.msra.mxu0 %v2116
    %2156 = vmatmul.bf16.gmra.mxu0 %v2048
    %v2157 = vpop.f32.mrf.mxu0
    %v2158 = vadd.f32 0.0, %v2157
    %v2159 = vpop.f32.mrf.mxu0
    %2160 = vdwg.mxu0
    %2161 = vmatpush.bf16.msra.mxu0 %v2131
    %2162 = vmatpush.bf16.msra.mxu0 %v2130
    %2163 = vmatpush.bf16.msra.mxu0 %v2129
    %2164 = vmatpush.bf16.msra.mxu0 %v2128
    %2165 = vmatpush.bf16.msra.mxu0 %v2127
    %2166 = vmatpush.bf16.msra.mxu0 %v2126
    %2167 = vmatpush.bf16.msra.mxu0 %v2125
    %2168 = vmatpush.bf16.msra.mxu0 %v2124
    %2169 = vmatmul.bf16.gmra.mxu0 %v2049
    %v2170 = vpop.f32.mrf.mxu0
    %v2171 = vadd.f32 %v2158, %v2170
    %v2172 = vpop.f32.mrf.mxu0
    %2173 = vdwg.mxu0
    %v2175 = vunpack.c.l.b16 %v1014
    %v2176 = vunpack.c.h.b16 %v1014
    %v2177 = vpack.c.b16 %v2175, %v2175
    %v2178 = vpack.c.b16 %v2176, %v2176
    %v2213 = vunpack.c.l.b16 %v1239
    %v2214 = vunpack.c.l.b16 %v1240
    %v2215 = vunpack.c.l.b16 %v1241
    %v2216 = vunpack.c.l.b16 %v1242
    %v2217 = vunpack.c.l.b16 %v1243
    %v2218 = vunpack.c.l.b16 %v1244
    %v2219 = vunpack.c.l.b16 %v1245
    %v2220 = vunpack.c.l.b16 %v1246
    %v2221 = vunpack.c.l.b16 %v1247
    %v2222 = vunpack.c.l.b16 %v1248
    %v2223 = vunpack.c.l.b16 %v1249
    %v2224 = vunpack.c.l.b16 %v1250
    %v2225 = vunpack.c.l.b16 %v1251
    %v2226 = vunpack.c.l.b16 %v1252
    %v2227 = vunpack.c.l.b16 %v1253
    %v2228 = vunpack.c.l.b16 %v1254
    %v2229 = vunpack.c.l.b16 %v1255
    %v2230 = vunpack.c.l.b16 %v1256
    %v2231 = vunpack.c.l.b16 %v1257
    %v2232 = vunpack.c.l.b16 %v1258
    %v2233 = vunpack.c.l.b16 %v1259
    %v2234 = vunpack.c.l.b16 %v1260
    %v2235 = vunpack.c.l.b16 %v1261
    %v2236 = vunpack.c.l.b16 %v1262
    %v2237 = vunpack.c.l.b16 %v1263
    %v2238 = vunpack.c.l.b16 %v1264
    %v2239 = vunpack.c.l.b16 %v1265
    %v2240 = vunpack.c.l.b16 %v1266
    %v2241 = vunpack.c.l.b16 %v1267
    %v2242 = vunpack.c.l.b16 %v1268
    %v2243 = vunpack.c.l.b16 %v1269
    %v2244 = vunpack.c.l.b16 %v1270
    %v2245 = vpack.c.b16 %v2214, %v2213
    %v2246 = vpack.c.b16 %v2216, %v2215
    %v2247 = vpack.c.b16 %v2218, %v2217
    %v2248 = vpack.c.b16 %v2220, %v2219
    %v2249 = vpack.c.b16 %v2222, %v2221
    %v2250 = vpack.c.b16 %v2224, %v2223
    %v2251 = vpack.c.b16 %v2226, %v2225
    %v2252 = vpack.c.b16 %v2228, %v2227
    %v2253 = vpack.c.b16 %v2230, %v2229
    %v2254 = vpack.c.b16 %v2232, %v2231
    %v2255 = vpack.c.b16 %v2234, %v2233
    %v2256 = vpack.c.b16 %v2236, %v2235
    %v2257 = vpack.c.b16 %v2238, %v2237
    %v2258 = vpack.c.b16 %v2240, %v2239
    %v2259 = vpack.c.b16 %v2242, %v2241
    %v2260 = vpack.c.b16 %v2244, %v2243
    %2277 = vmatpush.bf16.msra.mxu0 %v2252
    %2278 = vmatpush.bf16.msra.mxu0 %v2251
    %2279 = vmatpush.bf16.msra.mxu0 %v2250
    %2280 = vmatpush.bf16.msra.mxu0 %v2249
    %2281 = vmatpush.bf16.msra.mxu0 %v2248
    %2282 = vmatpush.bf16.msra.mxu0 %v2247
    %2283 = vmatpush.bf16.msra.mxu0 %v2246
    %2284 = vmatpush.bf16.msra.mxu0 %v2245
    %2285 = vmatmul.bf16.gmra.mxu0 %v2177
    %v2286 = vpop.f32.mrf.mxu0
    %v2287 = vadd.f32 0.0, %v2286
    %v2288 = vpop.f32.mrf.mxu0
    %2289 = vdwg.mxu0
    %2290 = vmatpush.bf16.msra.mxu0 %v2260
    %2291 = vmatpush.bf16.msra.mxu0 %v2259
    %2292 = vmatpush.bf16.msra.mxu0 %v2258
    %2293 = vmatpush.bf16.msra.mxu0 %v2257
    %2294 = vmatpush.bf16.msra.mxu0 %v2256
    %2295 = vmatpush.bf16.msra.mxu0 %v2255
    %2296 = vmatpush.bf16.msra.mxu0 %v2254
    %2297 = vmatpush.bf16.msra.mxu0 %v2253
    %2298 = vmatmul.bf16.gmra.mxu0 %v2178
    %v2299 = vpop.f32.mrf.mxu0
    %v2300 = vadd.f32 %v2287, %v2299
    %v2301 = vpop.f32.mrf.mxu0
    %2302 = vdwg.mxu0
    %vm2303 = vcmask 1041408
    %v2304 = vsel %vm2303, %v1397, 0.0
    %v2305 = vsel %vm2303, %v1526, 0.0
    %v2306 = vadd.f32 %v2304, %v2305
    %v2307 = vsel %vm2303, %v1655, 0.0
    %v2308 = vadd.f32 %v2306, %v2307
    %v2309 = vsel %vm2303, %v1784, 0.0
    %v2310 = vadd.f32 %v2308, %v2309
    %v2311 = vsel %vm2303, %v1913, 0.0
    %v2312 = vadd.f32 %v2310, %v2311
    %v2313 = vsel %vm2303, %v2042, 0.0
    %v2314 = vadd.f32 %v2312, %v2313
    %v2315 = vsel %vm2303, %v2171, 0.0
    %v2316 = vadd.f32 %v2314, %v2315
    %v2317 = vsel %vm2303, %v2300, 0.0
    %v2318 = vadd.f32 %v2316, %v2317
    %v2319 = vld [vmem:[%s7] sm:$0x1]
    %v2321 = vperm.slane %v2319, 0
    %v2323 = vadd.f32 %v2318, %v2321
    %2324 = vst [vmem:[#allocation10] sm:$0x3] %v2323
    // Predicated region
    $region46: #{tpu_custom_call.1} parent=1 // pred_check
      _
    $region47: #{tpu_custom_call.1} parent=1 // pred_check_branch
      %2326 = sbr.rel (0) target = $region49
    $region48: #{tpu_custom_call.1} parent=1 // pred_region
      %2328 = vsyncadd [#allocation6], 0
      %s2330 = sshll.u32 [#allocation10], 4
      %s2331 = int_to_ptr.vmem [resolvable:$true] %s2330
      %s2332 = sshll.u32 %s8, 4
      %s2333 = int_to_ptr.hbm [resolvable:$true] %s2332
      %2335 = dma.vmem_to_hbm [thread:$0]  %s2331, 32, %s2333, [#allocation6]
    $region49: #{tpu_custom_call.1} parent=1 // pred_fallthru
      _
    // Predicated region
    $region50: #{tpu_custom_call.1} parent=1 // pred_check
      _
    $region51: #{tpu_custom_call.1} parent=1 // pred_check_branch
      %2337 = sbr.rel (0) target = $region53
    $region52: #{tpu_custom_call.1} parent=1 // pred_region
      %2339 = dma.done [#allocation6], 32
    $region53: #{tpu_custom_call.1} parent=1 // pred_fallthru
      _
    %2340 = vsyncpa [#allocation5], 1
    %2341 = vsyncpa [#allocation8], 1
    %2342 = vsyncpa [#allocation6], 1

</llo_original>
